<compile_context>
chip_gen: v7x
topology: tpu7x:2x2x1
jax: 0.10.0
libtpu: 0.0.40
codegen_flags: <defaults>
</compile_context>

<pallas_src>
import jax
import jax.numpy as jnp
from jax.experimental import pallas as pl
from jax.experimental.pallas import tpu as pltpu

_INNER_MLP_MULT = 2
_BN_EPS = 1e-5


def _edge_edge_kernel(eps_ref,                      # SMEM (1,) f32
                      x_ref,                        # VMEM [E,H]  f32
                      a_ref,                        # VMEM [E,E]  int8 (0/1)
                      wg0_ref, wg1_ref, wg2_ref,    # VMEM [H,H]  bf16 each
                      bA_ref,                       # VMEM [1,H]  f32
                      wm1_ref, gm1_ref, bm1_ref,    # [H,2H] bf16, [1,2H] f32 x2
                      wm2_ref, gm2_ref, bm2_ref,    # [2H,H] bf16, [1,H]  f32 x2
                      out_ref):                     # VMEM [E,H]  f32
    x32 = x_ref[...]
    x16 = x32.astype(jnp.bfloat16)
    # Widen the 0/1 int8 adjacency to bf16 once (cheap VPU pass), reuse twice.
    a16 = a_ref[...].astype(jnp.bfloat16)
    inv_e = 1.0 / x32.shape[0]

    # ---- two channel-doubling gathers, dense adjacency on the MXU ----------
    # TODO(synk): for large sparse graphs replace the dense [E,E] operand with
    # a scalar-prefetched neighbor-index gather (O(nnz*H) instead of O(E^2*H)).
    ax16 = jnp.dot(a16, x16, preferred_element_type=jnp.float32).astype(jnp.bfloat16)
    aax16 = jnp.dot(a16, ax16, preferred_element_type=jnp.float32).astype(jnp.bfloat16)

    # Fused 4H->H linear on [X | AX | AX | AAX]: the duplicated AX block is
    # folded into wg1 (= W1+W2) in the wrapper, and the remaining 3H->H linear
    # is three accumulated K=H dots (MXU accumulates anyway; no concat copy).
    lin = (jnp.dot(x16, wg0_ref[...], preferred_element_type=jnp.float32)
           + jnp.dot(ax16, wg1_ref[...], preferred_element_type=jnp.float32)
           + jnp.dot(aax16, wg2_ref[...], preferred_element_type=jnp.float32)
           + bA_ref[...])

    # ---- residual-style mix with eps (scalar from SMEM), f32 path ----------
    eps = eps_ref[0]
    y = lin + (1.0 + eps) * x32

    # ---- edge_mlp: Linear(H->2H, no bias) -> BN1d(train) -> ReLU -----------
    h1 = jnp.dot(y.astype(jnp.bfloat16), wm1_ref[...],
                 preferred_element_type=jnp.float32)
    mu1 = jnp.sum(h1, axis=0, keepdims=True) * inv_e
    d1 = h1 - mu1
    var1 = jnp.sum(d1 * d1, axis=0, keepdims=True) * inv_e     # two-pass, biased
    h1 = d1 * jax.lax.rsqrt(var1 + _BN_EPS) * gm1_ref[...] + bm1_ref[...]
    h1 = jnp.maximum(h1, 0.0)

    # ---- Linear(2H->H, no bias) -> BN1d(train) -> ReLU ---------------------
    h2 = jnp.dot(h1.astype(jnp.bfloat16), wm2_ref[...],
                 preferred_element_type=jnp.float32)
    mu2 = jnp.sum(h2, axis=0, keepdims=True) * inv_e
    d2 = h2 - mu2
    var2 = jnp.sum(d2 * d2, axis=0, keepdims=True) * inv_e
    h2 = d2 * jax.lax.rsqrt(var2 + _BN_EPS) * gm2_ref[...] + bm2_ref[...]
    out_ref[...] = jnp.maximum(h2, 0.0)


def edge_edge_forward(edge_rep, adj, params):
    """edge_rep: [E, H] f32, adj: [E, E] f32 (0/1) edge-adjacency."""
    E, H = edge_rep.shape
    Hm = H * _INNER_MLP_MULT

    # Fold the duplicated AX block of the PyTorch concat [X, AX, AX, AAX] into
    # the weight (sum in f32, then cast): blocks are [W0, W1+W2, W3], each [H,H].
    w = params["W_lin"]
    wg0 = w[0 * H:1 * H].astype(jnp.bfloat16)
    wg1 = (w[1 * H:2 * H] + w[2 * H:3 * H]).astype(jnp.bfloat16)
    wg2 = w[3 * H:4 * H].astype(jnp.bfloat16)

    # MXU operands: weights bf16; adjacency int8 (0/1 exact) widened in-kernel;
    # edge_rep stays f32 so the residual path carries no bf16 rounding.
    a8 = adj.astype(jnp.int8)
    w1_16 = params["W1"].astype(jnp.bfloat16)
    w2_16 = params["W2"].astype(jnp.bfloat16)

    args = (params["eps"],                      # -> SMEM scalar
            edge_rep, a8, wg0, wg1, wg2, params["b_lin"],
            w1_16, params["gamma1"], params["beta1"],
            w2_16, params["gamma2"], params["beta2"])

    smem = pl.BlockSpec(memory_space=pltpu.MemorySpace.SMEM)
    vmem = pl.BlockSpec(memory_space=pltpu.MemorySpace.VMEM)
    in_specs = [smem] + [vmem] * (len(args) - 1)

    flops = int(2 * E * E * H * 2                 # A@X and A@(AX)
                + 2 * E * H * H * 3               # fused 3H->H linear (3 dots)
                + 2 * E * H * Hm + 2 * E * Hm * H)  # edge_mlp matmuls
    bytes_accessed = int(E * E                    # int8 adjacency
                         + E * H * 4 * 2          # x in + out
                         + (3 * H * H + H * Hm + Hm * H) * 2   # bf16 weights
                         + (H + 2 * Hm + 2 * H) * 4)           # bias/gamma/beta

    return pl.pallas_call(
        _edge_edge_kernel,
        out_shape=jax.ShapeDtypeStruct((E, H), jnp.float32),
        in_specs=in_specs,
        out_specs=vmem,
        compiler_params=pltpu.CompilerParams(
            vmem_limit_bytes=32 * 1024 * 1024),
        cost_estimate=pl.CostEstimate(
            flops=flops, transcendentals=3 * H, bytes_accessed=bytes_accessed),
    )(*args)


def init_params(key, hidden_dim):
    H = hidden_dim
    Hm = H * _INNER_MLP_MULT
    ks = jax.random.split(key, 4)
    scale_lin = 1.0 / jnp.sqrt(4.0 * H)
    scale_m1 = 1.0 / jnp.sqrt(1.0 * H)
    scale_m2 = 1.0 / jnp.sqrt(1.0 * Hm)
    return {
        # self.linear: Linear(4H, H) with bias (stored as [in, out] for x @ W)
        "W_lin": jax.random.normal(ks[0], (4 * H, H), jnp.float32) * scale_lin,
        "b_lin": jax.random.normal(ks[1], (1, H), jnp.float32) * scale_lin,
        # edge_mlp Linear(H, 2H, bias=False) and Linear(2H, H, bias=False)
        "W1": jax.random.normal(ks[2], (H, Hm), jnp.float32) * scale_m1,
        "W2": jax.random.normal(ks[3], (Hm, H), jnp.float32) * scale_m2,
        # BatchNorm1d affine params (torch default init: gamma=1, beta=0)
        "gamma1": jnp.ones((1, Hm), jnp.float32),
        "beta1": jnp.zeros((1, Hm), jnp.float32),
        "gamma2": jnp.ones((1, H), jnp.float32),
        "beta2": jnp.zeros((1, H), jnp.float32),
        # self.eps = Parameter(torch.tensor(0.1))
        "eps": jnp.full((1,), 0.1, jnp.float32),
    }


def make_cycle_edge_adjacency(num_edges):
    """Edges of a cycle graph: edge i touches nodes (i, i+1); it shares a node
    with edges i-1 and i+1 (mod E)."""
    E = num_edges
    idx = jnp.arange(E)
    adj = jnp.zeros((E, E), jnp.float32)
    adj = adj.at[idx, (idx - 1) % E].set(1.0)
    adj = adj.at[idx, (idx + 1) % E].set(1.0)
    return adj


def _reference_f32(x, a, p):
    """Pure-JAX f32 reference matching the PyTorch forward (training-mode BN)."""
    ax = a @ x
    aax = a @ ax
    g2 = jnp.concatenate([x, ax, ax, aax], axis=-1)
    lin = g2 @ p["W_lin"] + p["b_lin"]
    y = lin + (1.0 + p["eps"][0]) * x
    h1 = y @ p["W1"]
    h1 = (h1 - h1.mean(0)) * jax.lax.rsqrt(h1.var(0) + _BN_EPS) * p["gamma1"] + p["beta1"]
    h1 = jnp.maximum(h1, 0.0)
    h2 = h1 @ p["W2"]
    h2 = (h2 - h2.mean(0)) * jax.lax.rsqrt(h2.var(0) + _BN_EPS) * p["gamma2"] + p["beta2"]
    return jnp.maximum(h2, 0.0)


if __name__ == "__main__":
    key = jax.random.PRNGKey(0)
    k_x, k_p = jax.random.split(key)

    E = 64           # number of edges
    H = 128          # hidden_dim (lane-aligned -> unmasked, lane-dense stores)

    edge_rep = jax.random.normal(k_x, (E, H), jnp.float32)
    adj = make_cycle_edge_adjacency(E)
    params = init_params(k_p, H)

    out = edge_edge_forward(edge_rep, adj, params)
    out = jax.block_until_ready(out)

    assert out.shape == (E, H) and out.dtype == jnp.float32
    assert bool(jnp.all(jnp.isfinite(out)))

    # Sanity-check against the f32 reference (bf16 MXU operands -> loose bound).
    ref = _reference_f32(edge_rep, adj, params)
    max_err = float(jnp.max(jnp.abs(out - ref)))
    assert max_err < 0.2, f"mismatch vs f32 reference: {max_err}"

    print("KERNEL_OK")
</pallas_src>

<mosaic_0001>
module attributes {stable_mosaic.version = 11 : i64} {
  func.func @_edge_edge_kernel(%arg0: memref<1xf32, #tpu.memory_space<smem>>, %arg1: memref<64x128xf32, #tpu.memory_space<vmem>>, %arg2: memref<64x64xi8, #tpu.memory_space<vmem>>, %arg3: memref<128x128xbf16, #tpu.memory_space<vmem>>, %arg4: memref<128x128xbf16, #tpu.memory_space<vmem>>, %arg5: memref<128x128xbf16, #tpu.memory_space<vmem>>, %arg6: memref<1x128xf32, #tpu.memory_space<vmem>>, %arg7: memref<128x256xbf16, #tpu.memory_space<vmem>>, %arg8: memref<1x256xf32, #tpu.memory_space<vmem>>, %arg9: memref<1x256xf32, #tpu.memory_space<vmem>>, %arg10: memref<256x128xbf16, #tpu.memory_space<vmem>>, %arg11: memref<1x128xf32, #tpu.memory_space<vmem>>, %arg12: memref<1x128xf32, #tpu.memory_space<vmem>>, %arg13: memref<64x128xf32, #tpu.memory_space<vmem>>) attributes {dimension_semantics = [], scalar_prefetch = 0 : i64, scratch_operands = 0 : i64, tpu.core_type = #tpu.core_type<tc>} {
    %c0 = arith.constant 0 : index
    %c0_0 = arith.constant 0 : index
    %0 = vector.load %arg1[%c0, %c0_0] : memref<64x128xf32, #tpu.memory_space<vmem>>, vector<64x128xf32>
    %1 = arith.truncf %0 : vector<64x128xf32> to vector<64x128xbf16>
    %c0_1 = arith.constant 0 : index
    %c0_2 = arith.constant 0 : index
    %2 = vector.load %arg2[%c0_1, %c0_2] : memref<64x64xi8, #tpu.memory_space<vmem>>, vector<64x64xi8>
    %3 = arith.sitofp %2 : vector<64x64xi8> to vector<64x64xbf16>
    %cst = arith.constant dense<0.000000e+00> : vector<64x128xf32>
    %4 = tpu.matmul %3, %1, %cst {dimension_numbers = #tpu.dot_dimension_numbers<[1], [0], [0], [1], [0, 0, 1, 1], [], []>} : vector<64x64xbf16>, vector<64x128xbf16>, vector<64x128xf32> -> vector<64x128xf32>
    %5 = arith.truncf %4 : vector<64x128xf32> to vector<64x128xbf16>
    %cst_3 = arith.constant dense<0.000000e+00> : vector<64x128xf32>
    %6 = tpu.matmul %3, %5, %cst_3 {dimension_numbers = #tpu.dot_dimension_numbers<[1], [0], [0], [1], [0, 0, 1, 1], [], []>} : vector<64x64xbf16>, vector<64x128xbf16>, vector<64x128xf32> -> vector<64x128xf32>
    %7 = arith.truncf %6 : vector<64x128xf32> to vector<64x128xbf16>
    %c0_4 = arith.constant 0 : index
    %c0_5 = arith.constant 0 : index
    %8 = vector.load %arg3[%c0_4, %c0_5] : memref<128x128xbf16, #tpu.memory_space<vmem>>, vector<128x128xbf16>
    %cst_6 = arith.constant dense<0.000000e+00> : vector<64x128xf32>
    %9 = tpu.matmul %1, %8, %cst_6 {dimension_numbers = #tpu.dot_dimension_numbers<[1], [0], [0], [1], [0, 0, 1, 1], [], []>} : vector<64x128xbf16>, vector<128x128xbf16>, vector<64x128xf32> -> vector<64x128xf32>
    %c0_7 = arith.constant 0 : index
    %c0_8 = arith.constant 0 : index
    %10 = vector.load %arg4[%c0_7, %c0_8] : memref<128x128xbf16, #tpu.memory_space<vmem>>, vector<128x128xbf16>
    %cst_9 = arith.constant dense<0.000000e+00> : vector<64x128xf32>
    %11 = tpu.matmul %5, %10, %cst_9 {dimension_numbers = #tpu.dot_dimension_numbers<[1], [0], [0], [1], [0, 0, 1, 1], [], []>} : vector<64x128xbf16>, vector<128x128xbf16>, vector<64x128xf32> -> vector<64x128xf32>
    %12 = arith.addf %9, %11 : vector<64x128xf32>
    %c0_10 = arith.constant 0 : index
    %c0_11 = arith.constant 0 : index
    %13 = vector.load %arg5[%c0_10, %c0_11] : memref<128x128xbf16, #tpu.memory_space<vmem>>, vector<128x128xbf16>
    %cst_12 = arith.constant dense<0.000000e+00> : vector<64x128xf32>
    %14 = tpu.matmul %7, %13, %cst_12 {dimension_numbers = #tpu.dot_dimension_numbers<[1], [0], [0], [1], [0, 0, 1, 1], [], []>} : vector<64x128xbf16>, vector<128x128xbf16>, vector<64x128xf32> -> vector<64x128xf32>
    %15 = arith.addf %12, %14 : vector<64x128xf32>
    %c0_13 = arith.constant 0 : index
    %c0_14 = arith.constant 0 : index
    %16 = vector.load %arg6[%c0_13, %c0_14] : memref<1x128xf32, #tpu.memory_space<vmem>>, vector<1x128xf32>
    %17 = vector.broadcast %16 : vector<1x128xf32> to vector<64x128xf32>
    %18 = arith.addf %15, %17 : vector<64x128xf32>
    %c0_15 = arith.constant 0 : index
    %19 = memref.load %arg0[%c0_15] : memref<1xf32, #tpu.memory_space<smem>>
    %cst_16 = arith.constant 1.000000e+00 : f32
    %20 = arith.addf %cst_16, %19 : f32
    %21 = vector.broadcast %20 : f32 to vector<64x128xf32>
    %22 = arith.mulf %21, %0 : vector<64x128xf32>
    %23 = arith.addf %18, %22 : vector<64x128xf32>
    %24 = arith.truncf %23 : vector<64x128xf32> to vector<64x128xbf16>
    %c0_17 = arith.constant 0 : index
    %c0_18 = arith.constant 0 : index
    %25 = vector.load %arg7[%c0_17, %c0_18] : memref<128x256xbf16, #tpu.memory_space<vmem>>, vector<128x256xbf16>
    %cst_19 = arith.constant dense<0.000000e+00> : vector<64x256xf32>
    %26 = tpu.matmul %24, %25, %cst_19 {dimension_numbers = #tpu.dot_dimension_numbers<[1], [0], [0], [1], [0, 0, 1, 1], [], []>} : vector<64x128xbf16>, vector<128x256xbf16>, vector<64x256xf32> -> vector<64x256xf32>
    %cst_20 = arith.constant dense<0.000000e+00> : vector<256xf32>
    %27 = vector.multi_reduction <add>, %26, %cst_20 [0] : vector<64x256xf32> to vector<256xf32>
    %28 = vector.shape_cast %27 : vector<256xf32> to vector<1x256xf32>
    %cst_21 = arith.constant 1.562500e-02 : f32
    %29 = vector.broadcast %cst_21 : f32 to vector<1x256xf32>
    %30 = arith.mulf %28, %29 : vector<1x256xf32>
    %31 = vector.broadcast %30 : vector<1x256xf32> to vector<64x256xf32>
    %32 = arith.subf %26, %31 : vector<64x256xf32>
    %33 = arith.mulf %32, %32 : vector<64x256xf32>
    %cst_22 = arith.constant dense<0.000000e+00> : vector<256xf32>
    %34 = vector.multi_reduction <add>, %33, %cst_22 [0] : vector<64x256xf32> to vector<256xf32>
    %35 = vector.shape_cast %34 : vector<256xf32> to vector<1x256xf32>
    %cst_23 = arith.constant 1.562500e-02 : f32
    %36 = vector.broadcast %cst_23 : f32 to vector<1x256xf32>
    %37 = arith.mulf %35, %36 : vector<1x256xf32>
    %cst_24 = arith.constant 9.99999974E-6 : f32
    %38 = vector.broadcast %cst_24 : f32 to vector<1x256xf32>
    %39 = arith.addf %37, %38 : vector<1x256xf32>
    %40 = math.rsqrt %39 : vector<1x256xf32>
    %41 = vector.broadcast %40 : vector<1x256xf32> to vector<64x256xf32>
    %42 = arith.mulf %32, %41 : vector<64x256xf32>
    %c0_25 = arith.constant 0 : index
    %c0_26 = arith.constant 0 : index
    %43 = vector.load %arg8[%c0_25, %c0_26] : memref<1x256xf32, #tpu.memory_space<vmem>>, vector<1x256xf32>
    %44 = vector.broadcast %43 : vector<1x256xf32> to vector<64x256xf32>
    %45 = arith.mulf %42, %44 : vector<64x256xf32>
    %c0_27 = arith.constant 0 : index
    %c0_28 = arith.constant 0 : index
    %46 = vector.load %arg9[%c0_27, %c0_28] : memref<1x256xf32, #tpu.memory_space<vmem>>, vector<1x256xf32>
    %47 = vector.broadcast %46 : vector<1x256xf32> to vector<64x256xf32>
    %48 = arith.addf %45, %47 : vector<64x256xf32>
    %cst_29 = arith.constant 0.000000e+00 : f32
    %49 = vector.broadcast %cst_29 : f32 to vector<64x256xf32>
    %50 = arith.maximumf %48, %49 : vector<64x256xf32>
    %51 = arith.truncf %50 : vector<64x256xf32> to vector<64x256xbf16>
    %c0_30 = arith.constant 0 : index
    %c0_31 = arith.constant 0 : index
    %52 = vector.load %arg10[%c0_30, %c0_31] : memref<256x128xbf16, #tpu.memory_space<vmem>>, vector<256x128xbf16>
    %cst_32 = arith.constant dense<0.000000e+00> : vector<64x128xf32>
    %53 = tpu.matmul %51, %52, %cst_32 {dimension_numbers = #tpu.dot_dimension_numbers<[1], [0], [0], [1], [0, 0, 1, 1], [], []>} : vector<64x256xbf16>, vector<256x128xbf16>, vector<64x128xf32> -> vector<64x128xf32>
    %cst_33 = arith.constant dense<0.000000e+00> : vector<128xf32>
    %54 = vector.multi_reduction <add>, %53, %cst_33 [0] : vector<64x128xf32> to vector<128xf32>
    %55 = vector.shape_cast %54 : vector<128xf32> to vector<1x128xf32>
    %cst_34 = arith.constant 1.562500e-02 : f32
    %56 = vector.broadcast %cst_34 : f32 to vector<1x128xf32>
    %57 = arith.mulf %55, %56 : vector<1x128xf32>
    %58 = vector.broadcast %57 : vector<1x128xf32> to vector<64x128xf32>
    %59 = arith.subf %53, %58 : vector<64x128xf32>
    %60 = arith.mulf %59, %59 : vector<64x128xf32>
    %cst_35 = arith.constant dense<0.000000e+00> : vector<128xf32>
    %61 = vector.multi_reduction <add>, %60, %cst_35 [0] : vector<64x128xf32> to vector<128xf32>
    %62 = vector.shape_cast %61 : vector<128xf32> to vector<1x128xf32>
    %cst_36 = arith.constant 1.562500e-02 : f32
    %63 = vector.broadcast %cst_36 : f32 to vector<1x128xf32>
    %64 = arith.mulf %62, %63 : vector<1x128xf32>
    %cst_37 = arith.constant 9.99999974E-6 : f32
    %65 = vector.broadcast %cst_37 : f32 to vector<1x128xf32>
    %66 = arith.addf %64, %65 : vector<1x128xf32>
    %67 = math.rsqrt %66 : vector<1x128xf32>
    %68 = vector.broadcast %67 : vector<1x128xf32> to vector<64x128xf32>
    %69 = arith.mulf %59, %68 : vector<64x128xf32>
    %c0_38 = arith.constant 0 : index
    %c0_39 = arith.constant 0 : index
    %70 = vector.load %arg11[%c0_38, %c0_39] : memref<1x128xf32, #tpu.memory_space<vmem>>, vector<1x128xf32>
    %71 = vector.broadcast %70 : vector<1x128xf32> to vector<64x128xf32>
    %72 = arith.mulf %69, %71 : vector<64x128xf32>
    %c0_40 = arith.constant 0 : index
    %c0_41 = arith.constant 0 : index
    %73 = vector.load %arg12[%c0_40, %c0_41] : memref<1x128xf32, #tpu.memory_space<vmem>>, vector<1x128xf32>
    %74 = vector.broadcast %73 : vector<1x128xf32> to vector<64x128xf32>
    %75 = arith.addf %72, %74 : vector<64x128xf32>
    %cst_42 = arith.constant 0.000000e+00 : f32
    %76 = vector.broadcast %cst_42 : f32 to vector<64x128xf32>
    %77 = arith.maximumf %75, %76 : vector<64x128xf32>
    %c0_43 = arith.constant 0 : index
    %c0_44 = arith.constant 0 : index
    %78 = vector.load %arg13[%c0_43, %c0_44] : memref<64x128xf32, #tpu.memory_space<vmem>>, vector<64x128xf32>
    tpu.vector_store %arg13[%c0_43, %c0_44], %77 {strides = array<i32>} : memref<64x128xf32, #tpu.memory_space<vmem>>, vector<64x128xf32>,
    return
  }
}

</mosaic_0001>

<llo_original>
// kernel: tpu_custom_call.1
$region0: #{tpu_custom_call.1}
  #allocation0 [shape = 'u32[]', space=smem, size = 0x4, offset = 0x4, fixed_abs, tag = 'smem constant byte address 0x4 - core index']
  #allocation1 [shape = 'u32[144,128]{1,0:T(1,128)}', space=vmem, size = 0x12000, scoped, tag = 'internal scratch']
  #allocation2 [shape = 'f32[1]{0:T(128)S(6)}', space=smem, size = 0x200, scoped, tag = 'scoped memory for tpu_custom_call.1']
  %s0 = inlined_call_operand.<no memory space> [shape: f32[1], index: 0, kind: input, shape index: {}]
  %s1 = inlined_call_operand.hbm [shape: f32[64,128], index: 1, kind: input, shape index: {}]
  %s2 = inlined_call_operand.hbm [shape: s8[64,64], index: 2, kind: input, shape index: {}]
  %s3 = inlined_call_operand.hbm [shape: bf16[128,128], index: 3, kind: input, shape index: {}]
  %s4 = inlined_call_operand.hbm [shape: bf16[128,128], index: 4, kind: input, shape index: {}]
  %s5 = inlined_call_operand.hbm [shape: bf16[128,128], index: 5, kind: input, shape index: {}]
  %s6 = inlined_call_operand.vmem [shape: f32[1,128], index: 6, kind: input, shape index: {}]
  %s7 = inlined_call_operand.hbm [shape: bf16[128,256], index: 7, kind: input, shape index: {}]
  %s8 = inlined_call_operand.vmem [shape: f32[1,256], index: 8, kind: input, shape index: {}]
  %s9 = inlined_call_operand.vmem [shape: f32[1,256], index: 9, kind: input, shape index: {}]
  %s10 = inlined_call_operand.hbm [shape: bf16[256,128], index: 10, kind: input, shape index: {}]
  %s11 = inlined_call_operand.vmem [shape: f32[1,128], index: 11, kind: input, shape index: {}]
  %s12 = inlined_call_operand.vmem [shape: f32[1,128], index: 12, kind: input, shape index: {}]
  %s13 = inlined_call_operand.hbm [shape: f32[64,128], index: 13, kind: output, shape index: {}]
  %s14 = sld [smem:[#allocation0]]
  $region90: #{tpu_custom_call.1} parent=0
    _
  %s16 = ssub.s32 1, %s14
  %s17 = scalar_select 0, %s16, %s14
  %18 = sst [smem:[#allocation2]] %s0
  $region1: #{tpu_custom_call.1} parent=0
    #allocation3 [shape = 'u8[32768]{0}', space=vmem, size = 0x8000, scoped, tag = 'input window, operand 1, single buffered']
    #allocation4 [shape = 's32[1]{0}', space=sflag, size = 0x4, scoped, tag = 'scoped memory for tpu_custom_call.1']
    #allocation5 [shape = 's32[1]{0}', space=sflag, size = 0x4, scoped, tag = 'scoped memory for tpu_custom_call.1']
    #allocation6 [shape = 'u8[8192]{0}', space=vmem, size = 0x2000, scoped, tag = 'input window, operand 2, single buffered']
    #allocation7 [shape = 's32[1]{0}', space=sflag, size = 0x4, scoped, tag = 'scoped memory for tpu_custom_call.1']
    #allocation8 [shape = 'u8[32768]{0}', space=vmem, size = 0x8000, scoped, tag = 'input window, operand 3, single buffered']
    #allocation9 [shape = 'u8[32768]{0}', space=vmem, size = 0x8000, scoped, tag = 'input window, operand 4, single buffered']
    #allocation10 [shape = 's32[1]{0}', space=sflag, size = 0x4, scoped, tag = 'scoped memory for tpu_custom_call.1']
    #allocation11 [shape = 'u8[32768]{0}', space=vmem, size = 0x8000, scoped, tag = 'input window, operand 5, single buffered']
    #allocation12 [shape = 'u8[65536]{0}', space=vmem, size = 0x10000, scoped, tag = 'input window, operand 7, single buffered']
    #allocation13 [shape = 's32[1]{0}', space=sflag, size = 0x4, scoped, tag = 'scoped memory for tpu_custom_call.1']
    #allocation14 [shape = 'u8[65536]{0}', space=vmem, size = 0x10000, scoped, tag = 'input window, operand 10, single buffered']
    #allocation15 [shape = 'u8[32768]{0}', space=vmem, size = 0x8000, scoped, tag = 'output window, operand 0, single buffered']
    %19 = vsyncpa [#allocation4], 0
    %20 = vsyncpa [#allocation7], 0
    %21 = vsyncpa [#allocation10], 0
    %22 = vsyncpa [#allocation13], 0
    %23 = vsyncpa [#allocation5], 0
    // Predicated region
    $region2: #{tpu_custom_call.1} parent=1 // pred_check
      _
    $region3: #{tpu_custom_call.1} parent=1 // pred_check_branch
      %25 = sbr.rel (0) target = $region5
    $region4: #{tpu_custom_call.1} parent=1 // pred_region
      _
    $region5: #{tpu_custom_call.1} parent=1 // pred_fallthru
      _
    // Predicated region
    $region6: #{tpu_custom_call.1} parent=1 // pred_check
      _
    $region7: #{tpu_custom_call.1} parent=1 // pred_check_branch
      %27 = sbr.rel (0) target = $region9
    $region8: #{tpu_custom_call.1} parent=1 // pred_region
      %s29 = ssub.s32 1024, 1024
      %30 = vsyncadd [#allocation4], %s29
      %s31 = sshll.u32 [#allocation3], 4
      %s32 = int_to_ptr.vmem [resolvable:$true] %s31
      %37 = dma.hbm_to_vmem [thread:$0]  %s1, 1024, %s32, [#allocation4], 128, 128, 8
    $region9: #{tpu_custom_call.1} parent=1 // pred_fallthru
      _
    // Predicated region
    $region10: #{tpu_custom_call.1} parent=1 // pred_check
      _
    $region11: #{tpu_custom_call.1} parent=1 // pred_check_branch
      %39 = sbr.rel (0) target = $region13
    $region12: #{tpu_custom_call.1} parent=1 // pred_region
      %s41 = ssub.s32 256, 256
      %42 = vsyncadd [#allocation7], %s41
      %s43 = sshll.u32 [#allocation6], 4
      %s44 = int_to_ptr.vmem [resolvable:$true] %s43
      %49 = dma.hbm_to_vmem [thread:$0]  %s2, 256, %s44, [#allocation7], 128, 128, 8
    $region13: #{tpu_custom_call.1} parent=1 // pred_fallthru
      _
    // Predicated region
    $region14: #{tpu_custom_call.1} parent=1 // pred_check
      _
    $region15: #{tpu_custom_call.1} parent=1 // pred_check_branch
      %51 = sbr.rel (0) target = $region17
    $region16: #{tpu_custom_call.1} parent=1 // pred_region
      %s53 = ssub.s32 1024, 1024
      %54 = vsyncadd [#allocation7], %s53
      %s55 = sshll.u32 [#allocation8], 4
      %s56 = int_to_ptr.vmem [resolvable:$true] %s55
      %61 = dma.hbm_to_vmem [thread:$0]  %s3, 1024, %s56, [#allocation7], 64, 64, 4
    $region17: #{tpu_custom_call.1} parent=1 // pred_fallthru
      _
    // Predicated region
    $region18: #{tpu_custom_call.1} parent=1 // pred_check
      _
    $region19: #{tpu_custom_call.1} parent=1 // pred_check_branch
      %63 = sbr.rel (0) target = $region21
    $region20: #{tpu_custom_call.1} parent=1 // pred_region
      %s65 = ssub.s32 1024, 1024
      %66 = vsyncadd [#allocation10], %s65
      %s67 = sshll.u32 [#allocation9], 4
      %s68 = int_to_ptr.vmem [resolvable:$true] %s67
      %73 = dma.hbm_to_vmem [thread:$0]  %s4, 1024, %s68, [#allocation10], 64, 64, 4
    $region21: #{tpu_custom_call.1} parent=1 // pred_fallthru
      _
    // Predicated region
    $region22: #{tpu_custom_call.1} parent=1 // pred_check
      _
    $region23: #{tpu_custom_call.1} parent=1 // pred_check_branch
      %75 = sbr.rel (0) target = $region25
    $region24: #{tpu_custom_call.1} parent=1 // pred_region
      %s77 = ssub.s32 1024, 1024
      %78 = vsyncadd [#allocation10], %s77
      %s79 = sshll.u32 [#allocation11], 4
      %s80 = int_to_ptr.vmem [resolvable:$true] %s79
      %85 = dma.hbm_to_vmem [thread:$0]  %s5, 1024, %s80, [#allocation10], 64, 64, 4
    $region25: #{tpu_custom_call.1} parent=1 // pred_fallthru
      _
    // Predicated region
    $region26: #{tpu_custom_call.1} parent=1 // pred_check
      _
    $region27: #{tpu_custom_call.1} parent=1 // pred_check_branch
      %87 = sbr.rel (0) target = $region29
    $region28: #{tpu_custom_call.1} parent=1 // pred_region
      _
    $region29: #{tpu_custom_call.1} parent=1 // pred_fallthru
      _
    // Predicated region
    $region30: #{tpu_custom_call.1} parent=1 // pred_check
      _
    $region31: #{tpu_custom_call.1} parent=1 // pred_check_branch
      %89 = sbr.rel (0) target = $region33
    $region32: #{tpu_custom_call.1} parent=1 // pred_region
      %s91 = ssub.s32 2048, 2048
      %92 = vsyncadd [#allocation13], %s91
      %s93 = sshll.u32 [#allocation12], 4
      %s94 = int_to_ptr.vmem [resolvable:$true] %s93
      %99 = dma.hbm_to_vmem [thread:$0]  %s7, 2048, %s94, [#allocation13], 128, 128, 8
    $region33: #{tpu_custom_call.1} parent=1 // pred_fallthru
      _
    // Predicated region
    $region34: #{tpu_custom_call.1} parent=1 // pred_check
      _
    $region35: #{tpu_custom_call.1} parent=1 // pred_check_branch
      %101 = sbr.rel (0) target = $region37
    $region36: #{tpu_custom_call.1} parent=1 // pred_region
      _
    $region37: #{tpu_custom_call.1} parent=1 // pred_fallthru
      _
    // Predicated region
    $region38: #{tpu_custom_call.1} parent=1 // pred_check
      _
    $region39: #{tpu_custom_call.1} parent=1 // pred_check_branch
      %103 = sbr.rel (0) target = $region41
    $region40: #{tpu_custom_call.1} parent=1 // pred_region
      _
    $region41: #{tpu_custom_call.1} parent=1 // pred_fallthru
      _
    // Predicated region
    $region42: #{tpu_custom_call.1} parent=1 // pred_check
      _
    $region43: #{tpu_custom_call.1} parent=1 // pred_check_branch
      %105 = sbr.rel (0) target = $region45
    $region44: #{tpu_custom_call.1} parent=1 // pred_region
      %s107 = ssub.s32 2048, 2048
      %108 = vsyncadd [#allocation13], %s107
      %s109 = sshll.u32 [#allocation14], 4
      %s110 = int_to_ptr.vmem [resolvable:$true] %s109
      %115 = dma.hbm_to_vmem [thread:$0]  %s10, 2048, %s110, [#allocation13], 64, 64, 4
    $region45: #{tpu_custom_call.1} parent=1 // pred_fallthru
      _
    // Predicated region
    $region46: #{tpu_custom_call.1} parent=1 // pred_check
      _
    $region47: #{tpu_custom_call.1} parent=1 // pred_check_branch
      %117 = sbr.rel (0) target = $region49
    $region48: #{tpu_custom_call.1} parent=1 // pred_region
      _
    $region49: #{tpu_custom_call.1} parent=1 // pred_fallthru
      _
    // Predicated region
    $region50: #{tpu_custom_call.1} parent=1 // pred_check
      _
    $region51: #{tpu_custom_call.1} parent=1 // pred_check_branch
      %119 = sbr.rel (0) target = $region53
    $region52: #{tpu_custom_call.1} parent=1 // pred_region
      _
    $region53: #{tpu_custom_call.1} parent=1 // pred_fallthru
      _
    // Predicated region
    $region54: #{tpu_custom_call.1} parent=1 // pred_check
      _
    $region55: #{tpu_custom_call.1} parent=1 // pred_check_branch
      %121 = sbr.rel (0) target = $region57
    $region56: #{tpu_custom_call.1} parent=1 // pred_region
      %122 = dma.done [#allocation4], 1024
    $region57: #{tpu_custom_call.1} parent=1 // pred_fallthru
      _
    // Predicated region
    $region58: #{tpu_custom_call.1} parent=1 // pred_check
      _
    $region59: #{tpu_custom_call.1} parent=1 // pred_check_branch
      %124 = sbr.rel (0) target = $region61
    $region60: #{tpu_custom_call.1} parent=1 // pred_region
      %125 = dma.done [#allocation7], 256
    $region61: #{tpu_custom_call.1} parent=1 // pred_fallthru
      _
    // Predicated region
    $region62: #{tpu_custom_call.1} parent=1 // pred_check
      _
    $region63: #{tpu_custom_call.1} parent=1 // pred_check_branch
      %127 = sbr.rel (0) target = $region65
    $region64: #{tpu_custom_call.1} parent=1 // pred_region
      %128 = dma.done [#allocation7], 1024
    $region65: #{tpu_custom_call.1} parent=1 // pred_fallthru
      _
    // Predicated region
    $region66: #{tpu_custom_call.1} parent=1 // pred_check
      _
    $region67: #{tpu_custom_call.1} parent=1 // pred_check_branch
      %130 = sbr.rel (0) target = $region69
    $region68: #{tpu_custom_call.1} parent=1 // pred_region
      %131 = dma.done [#allocation10], 1024
    $region69: #{tpu_custom_call.1} parent=1 // pred_fallthru
      _
    // Predicated region
    $region70: #{tpu_custom_call.1} parent=1 // pred_check
      _
    $region71: #{tpu_custom_call.1} parent=1 // pred_check_branch
      %133 = sbr.rel (0) target = $region73
    $region72: #{tpu_custom_call.1} parent=1 // pred_region
      %134 = dma.done [#allocation10], 1024
    $region73: #{tpu_custom_call.1} parent=1 // pred_fallthru
      _
    // Predicated region
    $region74: #{tpu_custom_call.1} parent=1 // pred_check
      _
    $region75: #{tpu_custom_call.1} parent=1 // pred_check_branch
      %136 = sbr.rel (0) target = $region77
    $region76: #{tpu_custom_call.1} parent=1 // pred_region
      %137 = dma.done [#allocation13], 2048
    $region77: #{tpu_custom_call.1} parent=1 // pred_fallthru
      _
    // Predicated region
    $region78: #{tpu_custom_call.1} parent=1 // pred_check
      _
    $region79: #{tpu_custom_call.1} parent=1 // pred_check_branch
      %139 = sbr.rel (0) target = $region81
    $region80: #{tpu_custom_call.1} parent=1 // pred_region
      %140 = dma.done [#allocation13], 2048
    $region81: #{tpu_custom_call.1} parent=1 // pred_fallthru
      _
    %v142 = vld [vmem:[#allocation3] sm:$0xff]
    %v143 = vld [vmem:[#allocation3 + $0x8] sm:$0xff]
    %v144 = vld [vmem:[#allocation3 + $0x10] sm:$0xff]
    %v145 = vld [vmem:[#allocation3 + $0x18] sm:$0xff]
    %v146 = vld [vmem:[#allocation3 + $0x20] sm:$0xff]
    %v147 = vld [vmem:[#allocation3 + $0x28] sm:$0xff]
    %v148 = vld [vmem:[#allocation3 + $0x30] sm:$0xff]
    %v149 = vld [vmem:[#allocation3 + $0x38] sm:$0xff]
    %v150 = vpack.c.bf16 %v143, %v142
    %v151 = vpack.c.bf16 %v145, %v144
    %v152 = vpack.c.bf16 %v147, %v146
    %v153 = vpack.c.bf16 %v149, %v148
    %v154 = vld [vmem:[#allocation6] sm:$0xff]
    %v155 = vld [vmem:[#allocation6 + $0x8] sm:$0xff]
    %v156 = vunpack.c.l.s8.bf16 %v154
    %v157 = vunpack.c.h.s8.bf16 %v154
    %v158 = vunpack.c.l.s8.bf16 %v155
    %v159 = vunpack.c.h.s8.bf16 %v155
    %vm160 = vcmask 523264
    %v162 = vsel %vm160, %v156, 0
    %v165 = vsel %vm160, %v157, 0
    %v168 = vsel %vm160, %v158, 0
    %v171 = vsel %vm160, %v159, 0
    %173 = vmatprep.subr.bf16.mxu0 0
    %174 = vmatpush1.bf16.msra.mxu0 %v150
    %175 = vmatprep.subr.bf16.mxu0 0
    %176 = vmatpush1.bf16.msra.mxu0 %v151
    %177 = vmatprep.subr.bf16.mxu0 0
    %178 = vmatpush1.bf16.msra.mxu0 %v152
    %179 = vmatprep.subr.bf16.mxu0 0
    %180 = vmatpush1.bf16.msra.mxu0 %v153
    %181 = vmatprep.subr.bf16.mxu0 0
    %182 = vmatpush1.bf16.msra.mxu0 0
    %183 = vmatprep.subr.bf16.mxu0 0
    %184 = vmatpush1.bf16.msra.mxu0 0
    %185 = vmatprep.subr.bf16.mxu0 0
    %186 = vmatpush1.bf16.msra.mxu0 0
    %187 = vmatprep.subr.bf16.mxu0 0
    %188 = vmatpush1.bf16.msra.mxu0 0
    %189 = vmatprep.subr.bf16.mxu0 0
    %190 = vmatpush1.bf16.msra.mxu0 0
    %191 = vmatprep.subr.bf16.mxu0 0
    %192 = vmatpush1.bf16.msra.mxu0 0
    %193 = vmatprep.subr.bf16.mxu0 0
    %194 = vmatpush1.bf16.msra.mxu0 0
    %195 = vmatprep.subr.bf16.mxu0 0
    %196 = vmatpush1.bf16.msra.mxu0 0
    %197 = vmatprep.subr.bf16.mxu0 0
    %198 = vmatpush1.bf16.msra.mxu0 0
    %199 = vmatprep.subr.bf16.mxu0 0
    %200 = vmatpush1.bf16.msra.mxu0 0
    %201 = vmatprep.subr.bf16.mxu0 0
    %202 = vmatpush1.bf16.msra.mxu0 0
    %203 = vmatprep.subr.bf16.mxu0 0
    %204 = vmatpush1.bf16.msra.mxu0 0
    %205 = vmatprep.mubr.bf16.mxu0 0
    %206 = vmatmul.mubr.bf16.gmra.mrb[0].mxu0 %v162
    %v207 = vpop.f32.mrb[0].mxu0
    %v208 = vadd.f32 0.0, %v207
    %v209 = vpop.f32.mrb[0].mxu0
    %v210 = vpop.f32.mrb[0].mxu0
    %v211 = vadd.f32 0.0, %v210
    %v212 = vpop.f32.mrb[0].mxu0
    %213 = vmatprep.mubr.bf16.mxu0 0
    %214 = vmatmul.mubr.bf16.gmra.mrb[0].mxu0 %v165
    %v215 = vpop.f32.mrb[0].mxu0
    %v216 = vadd.f32 0.0, %v215
    %v217 = vpop.f32.mrb[0].mxu0
    %v218 = vpop.f32.mrb[0].mxu0
    %v219 = vadd.f32 0.0, %v218
    %v220 = vpop.f32.mrb[0].mxu0
    %221 = vmatprep.mubr.bf16.mxu0 0
    %222 = vmatmul.mubr.bf16.gmra.mrb[0].mxu0 %v168
    %v223 = vpop.f32.mrb[0].mxu0
    %v224 = vadd.f32 0.0, %v223
    %v225 = vpop.f32.mrb[0].mxu0
    %v226 = vpop.f32.mrb[0].mxu0
    %v227 = vadd.f32 0.0, %v226
    %v228 = vpop.f32.mrb[0].mxu0
    %229 = vmatprep.mubr.bf16.mxu0 0
    %230 = vmatmul.mubr.bf16.gmra.mrb[0].mxu0 %v171
    %v231 = vpop.f32.mrb[0].mxu0
    %v232 = vadd.f32 0.0, %v231
    %v233 = vpop.f32.mrb[0].mxu0
    %v234 = vpop.f32.mrb[0].mxu0
    %v235 = vadd.f32 0.0, %v234
    %v236 = vpop.f32.mrb[0].mxu0
    %237 = vdwg.mxu0
    %v238 = vpack.c.bf16 %v211, %v208
    %v239 = vpack.c.bf16 %v219, %v216
    %v240 = vpack.c.bf16 %v227, %v224
    %v241 = vpack.c.bf16 %v235, %v232
    %242 = vmatprep.subr.bf16.mxu0 0
    %243 = vmatpush1.bf16.msra.mxu0 %v238
    %244 = vmatprep.subr.bf16.mxu0 0
    %245 = vmatpush1.bf16.msra.mxu0 %v239
    %246 = vmatprep.subr.bf16.mxu0 0
    %247 = vmatpush1.bf16.msra.mxu0 %v240
    %248 = vmatprep.subr.bf16.mxu0 0
    %249 = vmatpush1.bf16.msra.mxu0 %v241
    %250 = vmatprep.subr.bf16.mxu0 0
    %251 = vmatpush1.bf16.msra.mxu0 0
    %252 = vmatprep.subr.bf16.mxu0 0
    %253 = vmatpush1.bf16.msra.mxu0 0
    %254 = vmatprep.subr.bf16.mxu0 0
    %255 = vmatpush1.bf16.msra.mxu0 0
    %256 = vmatprep.subr.bf16.mxu0 0
    %257 = vmatpush1.bf16.msra.mxu0 0
    %258 = vmatprep.subr.bf16.mxu0 0
    %259 = vmatpush1.bf16.msra.mxu0 0
    %260 = vmatprep.subr.bf16.mxu0 0
    %261 = vmatpush1.bf16.msra.mxu0 0
    %262 = vmatprep.subr.bf16.mxu0 0
    %263 = vmatpush1.bf16.msra.mxu0 0
    %264 = vmatprep.subr.bf16.mxu0 0
    %265 = vmatpush1.bf16.msra.mxu0 0
    %266 = vmatprep.subr.bf16.mxu0 0
    %267 = vmatpush1.bf16.msra.mxu0 0
    %268 = vmatprep.subr.bf16.mxu0 0
    %269 = vmatpush1.bf16.msra.mxu0 0
    %270 = vmatprep.subr.bf16.mxu0 0
    %271 = vmatpush1.bf16.msra.mxu0 0
    %272 = vmatprep.subr.bf16.mxu0 0
    %273 = vmatpush1.bf16.msra.mxu0 0
    %274 = vmatprep.mubr.bf16.mxu0 0
    %275 = vmatmul.mubr.bf16.gmra.mrb[0].mxu0 %v162
    %v276 = vpop.f32.mrb[0].mxu0
    %v277 = vadd.f32 0.0, %v276
    %v278 = vpop.f32.mrb[0].mxu0
    %v279 = vpop.f32.mrb[0].mxu0
    %v280 = vadd.f32 0.0, %v279
    %v281 = vpop.f32.mrb[0].mxu0
    %282 = vmatprep.mubr.bf16.mxu0 0
    %283 = vmatmul.mubr.bf16.gmra.mrb[0].mxu0 %v165
    %v284 = vpop.f32.mrb[0].mxu0
    %v285 = vadd.f32 0.0, %v284
    %v286 = vpop.f32.mrb[0].mxu0
    %v287 = vpop.f32.mrb[0].mxu0
    %v288 = vadd.f32 0.0, %v287
    %v289 = vpop.f32.mrb[0].mxu0
    %290 = vmatprep.mubr.bf16.mxu0 0
    %291 = vmatmul.mubr.bf16.gmra.mrb[0].mxu0 %v168
    %v292 = vpop.f32.mrb[0].mxu0
    %v293 = vadd.f32 0.0, %v292
    %v294 = vpop.f32.mrb[0].mxu0
    %v295 = vpop.f32.mrb[0].mxu0
    %v296 = vadd.f32 0.0, %v295
    %v297 = vpop.f32.mrb[0].mxu0
    %298 = vmatprep.mubr.bf16.mxu0 0
    %299 = vmatmul.mubr.bf16.gmra.mrb[0].mxu0 %v171
    %v300 = vpop.f32.mrb[0].mxu0
    %v301 = vadd.f32 0.0, %v300
    %v302 = vpop.f32.mrb[0].mxu0
    %v303 = vpop.f32.mrb[0].mxu0
    %v304 = vadd.f32 0.0, %v303
    %v305 = vpop.f32.mrb[0].mxu0
    %306 = vdwg.mxu0
    %v307 = vpack.c.bf16 %v280, %v277
    %v308 = vpack.c.bf16 %v288, %v285
    %v309 = vpack.c.bf16 %v296, %v293
    %v310 = vpack.c.bf16 %v304, %v301
    %v311 = vld [vmem:[#allocation8] sm:$0xf]
    %v312 = vld [vmem:[#allocation8 + $0x4] sm:$0xf]
    %v313 = vld [vmem:[#allocation8 + $0x8] sm:$0xf]
    %v314 = vld [vmem:[#allocation8 + $0xc] sm:$0xf]
    %v315 = vld [vmem:[#allocation8 + $0x10] sm:$0xf]
    %v316 = vld [vmem:[#allocation8 + $0x14] sm:$0xf]
    %v317 = vld [vmem:[#allocation8 + $0x18] sm:$0xf]
    %v318 = vld [vmem:[#allocation8 + $0x1c] sm:$0xf]
    %v319 = vld [vmem:[#allocation8 + $0x20] sm:$0xf]
    %v320 = vld [vmem:[#allocation8 + $0x24] sm:$0xf]
    %v321 = vld [vmem:[#allocation8 + $0x28] sm:$0xf]
    %v322 = vld [vmem:[#allocation8 + $0x2c] sm:$0xf]
    %v323 = vld [vmem:[#allocation8 + $0x30] sm:$0xf]
    %v324 = vld [vmem:[#allocation8 + $0x34] sm:$0xf]
    %v325 = vld [vmem:[#allocation8 + $0x38] sm:$0xf]
    %v326 = vld [vmem:[#allocation8 + $0x3c] sm:$0xf]
    %v327 = vld [vmem:[#allocation9] sm:$0xf]
    %v328 = vld [vmem:[#allocation9 + $0x4] sm:$0xf]
    %v329 = vld [vmem:[#allocation9 + $0x8] sm:$0xf]
    %v330 = vld [vmem:[#allocation9 + $0xc] sm:$0xf]
    %v331 = vld [vmem:[#allocation9 + $0x10] sm:$0xf]
    %v332 = vld [vmem:[#allocation9 + $0x14] sm:$0xf]
    %v333 = vld [vmem:[#allocation9 + $0x18] sm:$0xf]
    %v334 = vld [vmem:[#allocation9 + $0x1c] sm:$0xf]
    %v335 = vld [vmem:[#allocation9 + $0x20] sm:$0xf]
    %v336 = vld [vmem:[#allocation9 + $0x24] sm:$0xf]
    %v337 = vld [vmem:[#allocation9 + $0x28] sm:$0xf]
    %v338 = vld [vmem:[#allocation9 + $0x2c] sm:$0xf]
    %v339 = vld [vmem:[#allocation9 + $0x30] sm:$0xf]
    %v340 = vld [vmem:[#allocation9 + $0x34] sm:$0xf]
    %v341 = vld [vmem:[#allocation9 + $0x38] sm:$0xf]
    %v342 = vld [vmem:[#allocation9 + $0x3c] sm:$0xf]
    %v359 = vunpack.c.l.b16 %v327
    %v360 = vunpack.c.l.b16 %v328
    %v361 = vunpack.c.l.b16 %v329
    %v362 = vunpack.c.l.b16 %v330
    %v363 = vunpack.c.l.b16 %v331
    %v364 = vunpack.c.l.b16 %v332
    %v365 = vunpack.c.l.b16 %v333
    %v366 = vunpack.c.l.b16 %v334
    %v367 = vunpack.c.l.b16 %v335
    %v368 = vunpack.c.l.b16 %v336
    %v369 = vunpack.c.l.b16 %v337
    %v370 = vunpack.c.l.b16 %v338
    %v371 = vunpack.c.l.b16 %v339
    %v372 = vunpack.c.l.b16 %v340
    %v373 = vunpack.c.l.b16 %v341
    %v374 = vunpack.c.l.b16 %v342
    %v375 = vpack.c.b16 %v360, %v359
    %v376 = vpack.c.b16 %v362, %v361
    %v377 = vpack.c.b16 %v364, %v363
    %v378 = vpack.c.b16 %v366, %v365
    %v379 = vpack.c.b16 %v368, %v367
    %v380 = vpack.c.b16 %v370, %v369
    %v381 = vpack.c.b16 %v372, %v371
    %v382 = vpack.c.b16 %v374, %v373
    %391 = vmatprep.subr.bf16.mxu0 0
    %392 = vmatpush1.bf16.msra.mxu0 %v375
    %393 = vmatprep.subr.bf16.mxu0 0
    %394 = vmatpush1.bf16.msra.mxu0 %v376
    %395 = vmatprep.subr.bf16.mxu0 0
    %396 = vmatpush1.bf16.msra.mxu0 %v377
    %397 = vmatprep.subr.bf16.mxu0 0
    %398 = vmatpush1.bf16.msra.mxu0 %v378
    %399 = vmatprep.subr.bf16.mxu0 0
    %400 = vmatpush1.bf16.msra.mxu0 %v379
    %401 = vmatprep.subr.bf16.mxu0 0
    %402 = vmatpush1.bf16.msra.mxu0 %v380
    %403 = vmatprep.subr.bf16.mxu0 0
    %404 = vmatpush1.bf16.msra.mxu0 %v381
    %405 = vmatprep.subr.bf16.mxu0 0
    %406 = vmatpush1.bf16.msra.mxu0 %v382
    %407 = vmatprep.subr.bf16.mxu0 0
    %408 = vmatpush1.bf16.msra.mxu0 0
    %409 = vmatprep.subr.bf16.mxu0 0
    %410 = vmatpush1.bf16.msra.mxu0 0
    %411 = vmatprep.subr.bf16.mxu0 0
    %412 = vmatpush1.bf16.msra.mxu0 0
    %413 = vmatprep.subr.bf16.mxu0 0
    %414 = vmatpush1.bf16.msra.mxu0 0
    %415 = vmatprep.subr.bf16.mxu0 0
    %416 = vmatpush1.bf16.msra.mxu0 0
    %417 = vmatprep.subr.bf16.mxu0 0
    %418 = vmatpush1.bf16.msra.mxu0 0
    %419 = vmatprep.subr.bf16.mxu0 0
    %420 = vmatpush1.bf16.msra.mxu0 0
    %421 = vmatprep.subr.bf16.mxu0 0
    %422 = vmatpush1.bf16.msra.mxu0 0
    %423 = vmatprep.mubr.bf16.mxu0 0
    %424 = vmatmul.mubr.bf16.gmra.mrb[0].mxu0 %v238
    %v425 = vpop.f32.mrb[0].mxu0
    %v426 = vadd.f32 0.0, %v425
    %v427 = vpop.f32.mrb[0].mxu0
    %v428 = vpop.f32.mrb[0].mxu0
    %v429 = vadd.f32 0.0, %v428
    %v430 = vpop.f32.mrb[0].mxu0
    %431 = vmatprep.mubr.bf16.mxu0 0
    %432 = vmatmul.mubr.bf16.gmra.mrb[0].mxu0 %v239
    %v433 = vpop.f32.mrb[0].mxu0
    %v434 = vadd.f32 0.0, %v433
    %v435 = vpop.f32.mrb[0].mxu0
    %v436 = vpop.f32.mrb[0].mxu0
    %v437 = vadd.f32 0.0, %v436
    %v438 = vpop.f32.mrb[0].mxu0
    %439 = vmatprep.mubr.bf16.mxu0 0
    %440 = vmatmul.mubr.bf16.gmra.mrb[0].mxu0 %v240
    %v441 = vpop.f32.mrb[0].mxu0
    %v442 = vadd.f32 0.0, %v441
    %v443 = vpop.f32.mrb[0].mxu0
    %v444 = vpop.f32.mrb[0].mxu0
    %v445 = vadd.f32 0.0, %v444
    %v446 = vpop.f32.mrb[0].mxu0
    %447 = vmatprep.mubr.bf16.mxu0 0
    %448 = vmatmul.mubr.bf16.gmra.mrb[0].mxu0 %v241
    %v449 = vpop.f32.mrb[0].mxu0
    %v450 = vadd.f32 0.0, %v449
    %v451 = vpop.f32.mrb[0].mxu0
    %v452 = vpop.f32.mrb[0].mxu0
    %v453 = vadd.f32 0.0, %v452
    %v454 = vpop.f32.mrb[0].mxu0
    %455 = vdwg.mxu0
    %v472 = vunpack.c.l.b16 %v311
    %v473 = vunpack.c.l.b16 %v312
    %v474 = vunpack.c.l.b16 %v313
    %v475 = vunpack.c.l.b16 %v314
    %v476 = vunpack.c.l.b16 %v315
    %v477 = vunpack.c.l.b16 %v316
    %v478 = vunpack.c.l.b16 %v317
    %v479 = vunpack.c.l.b16 %v318
    %v480 = vunpack.c.l.b16 %v319
    %v481 = vunpack.c.l.b16 %v320
    %v482 = vunpack.c.l.b16 %v321
    %v483 = vunpack.c.l.b16 %v322
    %v484 = vunpack.c.l.b16 %v323
    %v485 = vunpack.c.l.b16 %v324
    %v486 = vunpack.c.l.b16 %v325
    %v487 = vunpack.c.l.b16 %v326
    %v488 = vpack.c.b16 %v473, %v472
    %v489 = vpack.c.b16 %v475, %v474
    %v490 = vpack.c.b16 %v477, %v476
    %v491 = vpack.c.b16 %v479, %v478
    %v492 = vpack.c.b16 %v481, %v480
    %v493 = vpack.c.b16 %v483, %v482
    %v494 = vpack.c.b16 %v485, %v484
    %v495 = vpack.c.b16 %v487, %v486
    %504 = vmatprep.subr.bf16.mxu0 0
    %505 = vmatpush1.bf16.msra.mxu0 %v488
    %506 = vmatprep.subr.bf16.mxu0 0
    %507 = vmatpush1.bf16.msra.mxu0 %v489
    %508 = vmatprep.subr.bf16.mxu0 0
    %509 = vmatpush1.bf16.msra.mxu0 %v490
    %510 = vmatprep.subr.bf16.mxu0 0
    %511 = vmatpush1.bf16.msra.mxu0 %v491
    %512 = vmatprep.subr.bf16.mxu0 0
    %513 = vmatpush1.bf16.msra.mxu0 %v492
    %514 = vmatprep.subr.bf16.mxu0 0
    %515 = vmatpush1.bf16.msra.mxu0 %v493
    %516 = vmatprep.subr.bf16.mxu0 0
    %517 = vmatpush1.bf16.msra.mxu0 %v494
    %518 = vmatprep.subr.bf16.mxu0 0
    %519 = vmatpush1.bf16.msra.mxu0 %v495
    %520 = vmatprep.subr.bf16.mxu0 0
    %521 = vmatpush1.bf16.msra.mxu0 0
    %522 = vmatprep.subr.bf16.mxu0 0
    %523 = vmatpush1.bf16.msra.mxu0 0
    %524 = vmatprep.subr.bf16.mxu0 0
    %525 = vmatpush1.bf16.msra.mxu0 0
    %526 = vmatprep.subr.bf16.mxu0 0
    %527 = vmatpush1.bf16.msra.mxu0 0
    %528 = vmatprep.subr.bf16.mxu0 0
    %529 = vmatpush1.bf16.msra.mxu0 0
    %530 = vmatprep.subr.bf16.mxu0 0
    %531 = vmatpush1.bf16.msra.mxu0 0
    %532 = vmatprep.subr.bf16.mxu0 0
    %533 = vmatpush1.bf16.msra.mxu0 0
    %534 = vmatprep.subr.bf16.mxu0 0
    %535 = vmatpush1.bf16.msra.mxu0 0
    %536 = vmatprep.mubr.bf16.mxu0 0
    %537 = vmatmul.mubr.bf16.gmra.mrb[0].mxu0 %v150
    %v538 = vpop.f32.mrb[0].mxu0
    %v539 = vadd.f32 %v426, %v538
    %v540 = vpop.f32.mrb[0].mxu0
    %v541 = vpop.f32.mrb[0].mxu0
    %v542 = vadd.f32 %v429, %v541
    %v543 = vpop.f32.mrb[0].mxu0
    %544 = vmatprep.mubr.bf16.mxu0 0
    %545 = vmatmul.mubr.bf16.gmra.mrb[0].mxu0 %v151
    %v546 = vpop.f32.mrb[0].mxu0
    %v547 = vadd.f32 %v434, %v546
    %v548 = vpop.f32.mrb[0].mxu0
    %v549 = vpop.f32.mrb[0].mxu0
    %v550 = vadd.f32 %v437, %v549
    %v551 = vpop.f32.mrb[0].mxu0
    %552 = vmatprep.mubr.bf16.mxu0 0
    %553 = vmatmul.mubr.bf16.gmra.mrb[0].mxu0 %v152
    %v554 = vpop.f32.mrb[0].mxu0
    %v555 = vadd.f32 %v442, %v554
    %v556 = vpop.f32.mrb[0].mxu0
    %v557 = vpop.f32.mrb[0].mxu0
    %v558 = vadd.f32 %v445, %v557
    %v559 = vpop.f32.mrb[0].mxu0
    %560 = vmatprep.mubr.bf16.mxu0 0
    %561 = vmatmul.mubr.bf16.gmra.mrb[0].mxu0 %v153
    %v562 = vpop.f32.mrb[0].mxu0
    %v563 = vadd.f32 %v450, %v562
    %v564 = vpop.f32.mrb[0].mxu0
    %v565 = vpop.f32.mrb[0].mxu0
    %v566 = vadd.f32 %v453, %v565
    %v567 = vpop.f32.mrb[0].mxu0
    %568 = vdwg.mxu0
    %v569 = vld [vmem:[#allocation11] sm:$0xf]
    %v570 = vld [vmem:[#allocation11 + $0x4] sm:$0xf]
    %v571 = vld [vmem:[#allocation11 + $0x8] sm:$0xf]
    %v572 = vld [vmem:[#allocation11 + $0xc] sm:$0xf]
    %v573 = vld [vmem:[#allocation11 + $0x10] sm:$0xf]
    %v574 = vld [vmem:[#allocation11 + $0x14] sm:$0xf]
    %v575 = vld [vmem:[#allocation11 + $0x18] sm:$0xf]
    %v576 = vld [vmem:[#allocation11 + $0x1c] sm:$0xf]
    %v577 = vld [vmem:[#allocation11 + $0x20] sm:$0xf]
    %v578 = vld [vmem:[#allocation11 + $0x24] sm:$0xf]
    %v579 = vld [vmem:[#allocation11 + $0x28] sm:$0xf]
    %v580 = vld [vmem:[#allocation11 + $0x2c] sm:$0xf]
    %v581 = vld [vmem:[#allocation11 + $0x30] sm:$0xf]
    %v582 = vld [vmem:[#allocation11 + $0x34] sm:$0xf]
    %v583 = vld [vmem:[#allocation11 + $0x38] sm:$0xf]
    %v584 = vld [vmem:[#allocation11 + $0x3c] sm:$0xf]
    %v601 = vunpack.c.l.b16 %v569
    %v602 = vunpack.c.l.b16 %v570
    %v603 = vunpack.c.l.b16 %v571
    %v604 = vunpack.c.l.b16 %v572
    %v605 = vunpack.c.l.b16 %v573
    %v606 = vunpack.c.l.b16 %v574
    %v607 = vunpack.c.l.b16 %v575
    %v608 = vunpack.c.l.b16 %v576
    %v609 = vunpack.c.l.b16 %v577
    %v610 = vunpack.c.l.b16 %v578
    %v611 = vunpack.c.l.b16 %v579
    %v612 = vunpack.c.l.b16 %v580
    %v613 = vunpack.c.l.b16 %v581
    %v614 = vunpack.c.l.b16 %v582
    %v615 = vunpack.c.l.b16 %v583
    %v616 = vunpack.c.l.b16 %v584
    %v617 = vpack.c.b16 %v602, %v601
    %v618 = vpack.c.b16 %v604, %v603
    %v619 = vpack.c.b16 %v606, %v605
    %v620 = vpack.c.b16 %v608, %v607
    %v621 = vpack.c.b16 %v610, %v609
    %v622 = vpack.c.b16 %v612, %v611
    %v623 = vpack.c.b16 %v614, %v613
    %v624 = vpack.c.b16 %v616, %v615
    %633 = vmatprep.subr.bf16.mxu0 0
    %634 = vmatpush1.bf16.msra.mxu0 %v617
    %635 = vmatprep.subr.bf16.mxu0 0
    %636 = vmatpush1.bf16.msra.mxu0 %v618
    %637 = vmatprep.subr.bf16.mxu0 0
    %638 = vmatpush1.bf16.msra.mxu0 %v619
    %639 = vmatprep.subr.bf16.mxu0 0
    %640 = vmatpush1.bf16.msra.mxu0 %v620
    %641 = vmatprep.subr.bf16.mxu0 0
    %642 = vmatpush1.bf16.msra.mxu0 %v621
    %643 = vmatprep.subr.bf16.mxu0 0
    %644 = vmatpush1.bf16.msra.mxu0 %v622
    %645 = vmatprep.subr.bf16.mxu0 0
    %646 = vmatpush1.bf16.msra.mxu0 %v623
    %647 = vmatprep.subr.bf16.mxu0 0
    %648 = vmatpush1.bf16.msra.mxu0 %v624
    %649 = vmatprep.subr.bf16.mxu0 0
    %650 = vmatpush1.bf16.msra.mxu0 0
    %651 = vmatprep.subr.bf16.mxu0 0
    %652 = vmatpush1.bf16.msra.mxu0 0
    %653 = vmatprep.subr.bf16.mxu0 0
    %654 = vmatpush1.bf16.msra.mxu0 0
    %655 = vmatprep.subr.bf16.mxu0 0
    %656 = vmatpush1.bf16.msra.mxu0 0
    %657 = vmatprep.subr.bf16.mxu0 0
    %658 = vmatpush1.bf16.msra.mxu0 0
    %659 = vmatprep.subr.bf16.mxu0 0
    %660 = vmatpush1.bf16.msra.mxu0 0
    %661 = vmatprep.subr.bf16.mxu0 0
    %662 = vmatpush1.bf16.msra.mxu0 0
    %663 = vmatprep.subr.bf16.mxu0 0
    %664 = vmatpush1.bf16.msra.mxu0 0
    %665 = vmatprep.mubr.bf16.mxu0 0
    %666 = vmatmul.mubr.bf16.gmra.mrb[0].mxu0 %v307
    %v667 = vpop.f32.mrb[0].mxu0
    %v668 = vadd.f32 0.0, %v667
    %v669 = vpop.f32.mrb[0].mxu0
    %v670 = vpop.f32.mrb[0].mxu0
    %v671 = vadd.f32 0.0, %v670
    %v672 = vpop.f32.mrb[0].mxu0
    %673 = vmatprep.mubr.bf16.mxu0 0
    %674 = vmatmul.mubr.bf16.gmra.mrb[0].mxu0 %v308
    %v675 = vpop.f32.mrb[0].mxu0
    %v676 = vadd.f32 0.0, %v675
    %v677 = vpop.f32.mrb[0].mxu0
    %v678 = vpop.f32.mrb[0].mxu0
    %v679 = vadd.f32 0.0, %v678
    %v680 = vpop.f32.mrb[0].mxu0
    %681 = vmatprep.mubr.bf16.mxu0 0
    %682 = vmatmul.mubr.bf16.gmra.mrb[0].mxu0 %v309
    %v683 = vpop.f32.mrb[0].mxu0
    %v684 = vadd.f32 0.0, %v683
    %v685 = vpop.f32.mrb[0].mxu0
    %v686 = vpop.f32.mrb[0].mxu0
    %v687 = vadd.f32 0.0, %v686
    %v688 = vpop.f32.mrb[0].mxu0
    %689 = vmatprep.mubr.bf16.mxu0 0
    %690 = vmatmul.mubr.bf16.gmra.mrb[0].mxu0 %v310
    %v691 = vpop.f32.mrb[0].mxu0
    %v692 = vadd.f32 0.0, %v691
    %v693 = vpop.f32.mrb[0].mxu0
    %v694 = vpop.f32.mrb[0].mxu0
    %v695 = vadd.f32 0.0, %v694
    %v696 = vpop.f32.mrb[0].mxu0
    %697 = vdwg.mxu0
    %v698 = vadd.f32 %v539, %v668
    %v699 = vadd.f32 %v542, %v671
    %v700 = vadd.f32 %v547, %v676
    %v701 = vadd.f32 %v550, %v679
    %v702 = vadd.f32 %v555, %v684
    %v703 = vadd.f32 %v558, %v687
    %v704 = vadd.f32 %v563, %v692
    %v705 = vadd.f32 %v566, %v695
    %v706 = vld [vmem:[%s6] sm:$0x1]
    %v708 = vlaneseq
    %v709 = vshrl.u32 %v708, 7
    %v710 = vsub.s32 0, %v709
    %v711 = vrot.slane %v706, %v710
    %v713 = vadd.f32 %v698, %v711
    %v714 = vadd.f32 %v699, %v711
    %v715 = vadd.f32 %v700, %v711
    %v716 = vadd.f32 %v701, %v711
    %v717 = vadd.f32 %v702, %v711
    %v718 = vadd.f32 %v703, %v711
    %v719 = vadd.f32 %v704, %v711
    %v720 = vadd.f32 %v705, %v711
    %s721 = sld [smem:[#allocation2]]
    %s722 = sadd.f32 %s721, 1.0
    %v723 = vstv %s722
    %v724 = vmul.f32 %v723, %v142
    %v725 = vmul.f32 %v723, %v143
    %v726 = vmul.f32 %v723, %v144
    %v727 = vmul.f32 %v723, %v145
    %v728 = vmul.f32 %v723, %v146
    %v729 = vmul.f32 %v723, %v147
    %v730 = vmul.f32 %v723, %v148
    %v731 = vmul.f32 %v723, %v149
    %v732 = vadd.f32 %v713, %v724
    %v733 = vadd.f32 %v714, %v725
    %v734 = vadd.f32 %v715, %v726
    %v735 = vadd.f32 %v716, %v727
    %v736 = vadd.f32 %v717, %v728
    %v737 = vadd.f32 %v718, %v729
    %v738 = vadd.f32 %v719, %v730
    %v739 = vadd.f32 %v720, %v731
    %v740 = vpack.c.bf16 %v733, %v732
    %v741 = vpack.c.bf16 %v735, %v734
    %v742 = vpack.c.bf16 %v737, %v736
    %v743 = vpack.c.bf16 %v739, %v738
    %v744 = vld [vmem:[#allocation12] sm:$0xff]
    %v745 = vld [vmem:[#allocation12 + $0x8] sm:$0xff]
    %v746 = vld [vmem:[#allocation12 + $0x10] sm:$0xff]
    %v747 = vld [vmem:[#allocation12 + $0x18] sm:$0xff]
    %v748 = vld [vmem:[#allocation12 + $0x20] sm:$0xff]
    %v749 = vld [vmem:[#allocation12 + $0x28] sm:$0xff]
    %v750 = vld [vmem:[#allocation12 + $0x30] sm:$0xff]
    %v751 = vld [vmem:[#allocation12 + $0x38] sm:$0xff]
    %v752 = vld [vmem:[#allocation12 + $0x40] sm:$0xff]
    %v753 = vld [vmem:[#allocation12 + $0x48] sm:$0xff]
    %v754 = vld [vmem:[#allocation12 + $0x50] sm:$0xff]
    %v755 = vld [vmem:[#allocation12 + $0x58] sm:$0xff]
    %v756 = vld [vmem:[#allocation12 + $0x60] sm:$0xff]
    %v757 = vld [vmem:[#allocation12 + $0x68] sm:$0xff]
    %v758 = vld [vmem:[#allocation12 + $0x70] sm:$0xff]
    %v759 = vld [vmem:[#allocation12 + $0x78] sm:$0xff]
    %v776 = vunpack.c.l.b16 %v744
    %v777 = vunpack.c.h.b16 %v744
    %v778 = vunpack.c.l.b16 %v745
    %v779 = vunpack.c.h.b16 %v745
    %v780 = vunpack.c.l.b16 %v746
    %v781 = vunpack.c.h.b16 %v746
    %v782 = vunpack.c.l.b16 %v747
    %v783 = vunpack.c.h.b16 %v747
    %v784 = vunpack.c.l.b16 %v748
    %v785 = vunpack.c.h.b16 %v748
    %v786 = vunpack.c.l.b16 %v749
    %v787 = vunpack.c.h.b16 %v749
    %v788 = vunpack.c.l.b16 %v750
    %v789 = vunpack.c.h.b16 %v750
    %v790 = vunpack.c.l.b16 %v751
    %v791 = vunpack.c.h.b16 %v751
    %v792 = vunpack.c.l.b16 %v752
    %v793 = vunpack.c.h.b16 %v752
    %v794 = vunpack.c.l.b16 %v753
    %v795 = vunpack.c.h.b16 %v753
    %v796 = vunpack.c.l.b16 %v754
    %v797 = vunpack.c.h.b16 %v754
    %v798 = vunpack.c.l.b16 %v755
    %v799 = vunpack.c.h.b16 %v755
    %v800 = vunpack.c.l.b16 %v756
    %v801 = vunpack.c.h.b16 %v756
    %v802 = vunpack.c.l.b16 %v757
    %v803 = vunpack.c.h.b16 %v757
    %v804 = vunpack.c.l.b16 %v758
    %v805 = vunpack.c.h.b16 %v758
    %v806 = vunpack.c.l.b16 %v759
    %v807 = vunpack.c.h.b16 %v759
    %v808 = vpack.c.b16 %v778, %v776
    %v809 = vpack.c.b16 %v779, %v777
    %v810 = vpack.c.b16 %v782, %v780
    %v811 = vpack.c.b16 %v783, %v781
    %v812 = vpack.c.b16 %v786, %v784
    %v813 = vpack.c.b16 %v787, %v785
    %v814 = vpack.c.b16 %v790, %v788
    %v815 = vpack.c.b16 %v791, %v789
    %v816 = vpack.c.b16 %v794, %v792
    %v817 = vpack.c.b16 %v795, %v793
    %v818 = vpack.c.b16 %v798, %v796
    %v819 = vpack.c.b16 %v799, %v797
    %v820 = vpack.c.b16 %v802, %v800
    %v821 = vpack.c.b16 %v803, %v801
    %v822 = vpack.c.b16 %v806, %v804
    %v823 = vpack.c.b16 %v807, %v805
    %840 = vmatprep.subr.bf16.mxu0 %v809
    %841 = vmatpush1.bf16.msra.mxu0 %v808
    %842 = vmatprep.subr.bf16.mxu0 %v811
    %843 = vmatpush1.bf16.msra.mxu0 %v810
    %844 = vmatprep.subr.bf16.mxu0 %v813
    %845 = vmatpush1.bf16.msra.mxu0 %v812
    %846 = vmatprep.subr.bf16.mxu0 %v815
    %847 = vmatpush1.bf16.msra.mxu0 %v814
    %848 = vmatprep.subr.bf16.mxu0 %v817
    %849 = vmatpush1.bf16.msra.mxu0 %v816
    %850 = vmatprep.subr.bf16.mxu0 %v819
    %851 = vmatpush1.bf16.msra.mxu0 %v818
    %852 = vmatprep.subr.bf16.mxu0 %v821
    %853 = vmatpush1.bf16.msra.mxu0 %v820
    %854 = vmatprep.subr.bf16.mxu0 %v823
    %855 = vmatpush1.bf16.msra.mxu0 %v822
    %856 = vmatprep.subr.bf16.mxu0 0
    %857 = vmatpush1.bf16.msra.mxu0 0
    %858 = vmatprep.subr.bf16.mxu0 0
    %859 = vmatpush1.bf16.msra.mxu0 0
    %860 = vmatprep.subr.bf16.mxu0 0
    %861 = vmatpush1.bf16.msra.mxu0 0
    %862 = vmatprep.subr.bf16.mxu0 0
    %863 = vmatpush1.bf16.msra.mxu0 0
    %864 = vmatprep.subr.bf16.mxu0 0
    %865 = vmatpush1.bf16.msra.mxu0 0
    %866 = vmatprep.subr.bf16.mxu0 0
    %867 = vmatpush1.bf16.msra.mxu0 0
    %868 = vmatprep.subr.bf16.mxu0 0
    %869 = vmatpush1.bf16.msra.mxu0 0
    %870 = vmatprep.subr.bf16.mxu0 0
    %871 = vmatpush1.bf16.msra.mxu0 0
    %872 = vmatprep.mubr.bf16.mxu0 0
    %873 = vmatmul.mubr.bf16.gmra.mrb[0].mxu0 %v740
    %v874 = vpop.f32.mrb[0].mxu0
    %v875 = vadd.f32 0.0, %v874
    %v876 = vpop.f32.mrb[0].mxu0
    %v877 = vadd.f32 0.0, %v876
    %v878 = vpop.f32.mrb[0].mxu0
    %v879 = vadd.f32 0.0, %v878
    %v880 = vpop.f32.mrb[0].mxu0
    %v881 = vadd.f32 0.0, %v880
    %882 = vmatprep.mubr.bf16.mxu0 0
    %883 = vmatmul.mubr.bf16.gmra.mrb[0].mxu0 %v741
    %v884 = vpop.f32.mrb[0].mxu0
    %v885 = vadd.f32 0.0, %v884
    %v886 = vpop.f32.mrb[0].mxu0
    %v887 = vadd.f32 0.0, %v886
    %v888 = vpop.f32.mrb[0].mxu0
    %v889 = vadd.f32 0.0, %v888
    %v890 = vpop.f32.mrb[0].mxu0
    %v891 = vadd.f32 0.0, %v890
    %892 = vmatprep.mubr.bf16.mxu0 0
    %893 = vmatmul.mubr.bf16.gmra.mrb[0].mxu0 %v742
    %v894 = vpop.f32.mrb[0].mxu0
    %v895 = vadd.f32 0.0, %v894
    %v896 = vpop.f32.mrb[0].mxu0
    %v897 = vadd.f32 0.0, %v896
    %v898 = vpop.f32.mrb[0].mxu0
    %v899 = vadd.f32 0.0, %v898
    %v900 = vpop.f32.mrb[0].mxu0
    %v901 = vadd.f32 0.0, %v900
    %902 = vmatprep.mubr.bf16.mxu0 0
    %903 = vmatmul.mubr.bf16.gmra.mrb[0].mxu0 %v743
    %v904 = vpop.f32.mrb[0].mxu0
    %v905 = vadd.f32 0.0, %v904
    %v906 = vpop.f32.mrb[0].mxu0
    %v907 = vadd.f32 0.0, %v906
    %v908 = vpop.f32.mrb[0].mxu0
    %v909 = vadd.f32 0.0, %v908
    %v910 = vpop.f32.mrb[0].mxu0
    %v911 = vadd.f32 0.0, %v910
    %912 = vdwg.mxu0
    %v913 = vadd.f32 %v875, %v879
    %v914 = vadd.f32 %v913, %v885
    %v915 = vadd.f32 %v914, %v889
    %v916 = vadd.f32 %v915, %v895
    %v917 = vadd.f32 %v916, %v899
    %v918 = vadd.f32 %v917, %v905
    %v919 = vadd.f32 %v918, %v909
    %v920 = vrot.slane %v919, 4
    %v921 = vadd.f32 %v919, %v920
    %v922 = vrot.slane %v921, 2
    %v923 = vadd.f32 %v921, %v922
    %v924 = vrot.slane %v923, 1
    %v925 = vadd.f32 %v923, %v924
    %v926 = vadd.f32 %v877, %v881
    %v927 = vadd.f32 %v926, %v887
    %v928 = vadd.f32 %v927, %v891
    %v929 = vadd.f32 %v928, %v897
    %v930 = vadd.f32 %v929, %v901
    %v931 = vadd.f32 %v930, %v907
    %v932 = vadd.f32 %v931, %v911
    %v933 = vrot.slane %v932, 4
    %v934 = vadd.f32 %v932, %v933
    %v935 = vrot.slane %v934, 2
    %v936 = vadd.f32 %v934, %v935
    %v937 = vrot.slane %v936, 1
    %v938 = vadd.f32 %v936, %v937
    %v939 = vmul.f32 %v925, 0.015625
    %v940 = vmul.f32 %v938, 0.015625
    %v941 = vsub.f32 %v875, %v939
    %v942 = vsub.f32 %v877, %v940
    %v943 = vsub.f32 %v879, %v939
    %v944 = vsub.f32 %v881, %v940
    %v945 = vsub.f32 %v885, %v939
    %v946 = vsub.f32 %v887, %v940
    %v947 = vsub.f32 %v889, %v939
    %v948 = vsub.f32 %v891, %v940
    %v949 = vsub.f32 %v895, %v939
    %v950 = vsub.f32 %v897, %v940
    %v951 = vsub.f32 %v899, %v939
    %v952 = vsub.f32 %v901, %v940
    %v953 = vsub.f32 %v905, %v939
    %v954 = vsub.f32 %v907, %v940
    %v955 = vsub.f32 %v909, %v939
    %v956 = vsub.f32 %v911, %v940
    %v957 = vmul.f32 %v941, %v941
    %v958 = vmul.f32 %v942, %v942
    %v959 = vmul.f32 %v943, %v943
    %v960 = vmul.f32 %v944, %v944
    %v961 = vmul.f32 %v945, %v945
    %v962 = vmul.f32 %v946, %v946
    %v963 = vmul.f32 %v947, %v947
    %v964 = vmul.f32 %v948, %v948
    %v965 = vmul.f32 %v949, %v949
    %v966 = vmul.f32 %v950, %v950
    %v967 = vmul.f32 %v951, %v951
    %v968 = vmul.f32 %v952, %v952
    %v969 = vmul.f32 %v953, %v953
    %v970 = vmul.f32 %v954, %v954
    %v971 = vmul.f32 %v955, %v955
    %v972 = vmul.f32 %v956, %v956
    %v973 = vadd.f32 %v957, %v959
    %v974 = vadd.f32 %v973, %v961
    %v975 = vadd.f32 %v974, %v963
    %v976 = vadd.f32 %v975, %v965
    %v977 = vadd.f32 %v976, %v967
    %v978 = vadd.f32 %v977, %v969
    %v979 = vadd.f32 %v978, %v971
    %v980 = vrot.slane %v979, 4
    %v981 = vadd.f32 %v979, %v980
    %v982 = vrot.slane %v981, 2
    %v983 = vadd.f32 %v981, %v982
    %v984 = vrot.slane %v983, 1
    %v985 = vadd.f32 %v983, %v984
    %v986 = vadd.f32 %v958, %v960
    %v987 = vadd.f32 %v986, %v962
    %v988 = vadd.f32 %v987, %v964
    %v989 = vadd.f32 %v988, %v966
    %v990 = vadd.f32 %v989, %v968
    %v991 = vadd.f32 %v990, %v970
    %v992 = vadd.f32 %v991, %v972
    %v993 = vrot.slane %v992, 4
    %v994 = vadd.f32 %v992, %v993
    %v995 = vrot.slane %v994, 2
    %v996 = vadd.f32 %v994, %v995
    %v997 = vrot.slane %v996, 1
    %v998 = vadd.f32 %v996, %v997
    %v999 = vmul.f32 %v985, 0.015625
    %v1000 = vmul.f32 %v998, 0.015625
    %v1001 = vadd.f32 %v999, 1e-05
    %v1002 = vadd.f32 %v1000, 1e-05
    %v1003 = vrsqrt.pop %v1001
    %v1004 = vrsqrt.pop %v1002
    %v1005 = vmul.f32 %v941, %v1003
    %v1006 = vmul.f32 %v942, %v1004
    %v1007 = vmul.f32 %v943, %v1003
    %v1008 = vmul.f32 %v944, %v1004
    %v1009 = vmul.f32 %v945, %v1003
    %v1010 = vmul.f32 %v946, %v1004
    %v1011 = vmul.f32 %v947, %v1003
    %v1012 = vmul.f32 %v948, %v1004
    %v1013 = vmul.f32 %v949, %v1003
    %v1014 = vmul.f32 %v950, %v1004
    %v1015 = vmul.f32 %v951, %v1003
    %v1016 = vmul.f32 %v952, %v1004
    %v1017 = vmul.f32 %v953, %v1003
    %v1018 = vmul.f32 %v954, %v1004
    %v1019 = vmul.f32 %v955, %v1003
    %v1020 = vmul.f32 %v956, %v1004
    %v1021 = vld [vmem:[%s8] sm:$0x3]
    %v1023 = vlaneseq
    %v1024 = vshrl.u32 %v1023, 7
    %v1025 = vsub.s32 0, %v1024
    %v1026 = vrot.slane %v1021, %v1025
    %v1027 = vlaneseq
    %v1028 = vshrl.u32 %v1027, 7
    %v1029 = vsub.s32 1, %v1028
    %v1030 = vrot.slane %v1021, %v1029
    %v1033 = vmul.f32 %v1005, %v1026
    %v1034 = vmul.f32 %v1006, %v1030
    %v1035 = vmul.f32 %v1007, %v1026
    %v1036 = vmul.f32 %v1008, %v1030
    %v1037 = vmul.f32 %v1009, %v1026
    %v1038 = vmul.f32 %v1010, %v1030
    %v1039 = vmul.f32 %v1011, %v1026
    %v1040 = vmul.f32 %v1012, %v1030
    %v1041 = vmul.f32 %v1013, %v1026
    %v1042 = vmul.f32 %v1014, %v1030
    %v1043 = vmul.f32 %v1015, %v1026
    %v1044 = vmul.f32 %v1016, %v1030
    %v1045 = vmul.f32 %v1017, %v1026
    %v1046 = vmul.f32 %v1018, %v1030
    %v1047 = vmul.f32 %v1019, %v1026
    %v1048 = vmul.f32 %v1020, %v1030
    %v1049 = vld [vmem:[%s9] sm:$0x3]
    %v1051 = vlaneseq
    %v1052 = vshrl.u32 %v1051, 7
    %v1053 = vsub.s32 0, %v1052
    %v1054 = vrot.slane %v1049, %v1053
    %v1055 = vlaneseq
    %v1056 = vshrl.u32 %v1055, 7
    %v1057 = vsub.s32 1, %v1056
    %v1058 = vrot.slane %v1049, %v1057
    %v1061 = vadd.f32 %v1033, %v1054
    %v1062 = vadd.f32 %v1034, %v1058
    %v1063 = vadd.f32 %v1035, %v1054
    %v1064 = vadd.f32 %v1036, %v1058
    %v1065 = vadd.f32 %v1037, %v1054
    %v1066 = vadd.f32 %v1038, %v1058
    %v1067 = vadd.f32 %v1039, %v1054
    %v1068 = vadd.f32 %v1040, %v1058
    %v1069 = vadd.f32 %v1041, %v1054
    %v1070 = vadd.f32 %v1042, %v1058
    %v1071 = vadd.f32 %v1043, %v1054
    %v1072 = vadd.f32 %v1044, %v1058
    %v1073 = vadd.f32 %v1045, %v1054
    %v1074 = vadd.f32 %v1046, %v1058
    %v1075 = vadd.f32 %v1047, %v1054
    %v1076 = vadd.f32 %v1048, %v1058
    %v1077 = vmax.f32 %v1061, 0.0
    %v1078 = vmax.f32 %v1062, 0.0
    %v1079 = vmax.f32 %v1063, 0.0
    %v1080 = vmax.f32 %v1064, 0.0
    %v1081 = vmax.f32 %v1065, 0.0
    %v1082 = vmax.f32 %v1066, 0.0
    %v1083 = vmax.f32 %v1067, 0.0
    %v1084 = vmax.f32 %v1068, 0.0
    %v1085 = vmax.f32 %v1069, 0.0
    %v1086 = vmax.f32 %v1070, 0.0
    %v1087 = vmax.f32 %v1071, 0.0
    %v1088 = vmax.f32 %v1072, 0.0
    %v1089 = vmax.f32 %v1073, 0.0
    %v1090 = vmax.f32 %v1074, 0.0
    %v1091 = vmax.f32 %v1075, 0.0
    %v1092 = vmax.f32 %v1076, 0.0
    %v1093 = vpack.c.bf16 %v1079, %v1077
    %v1094 = vpack.c.bf16 %v1080, %v1078
    %v1095 = vpack.c.bf16 %v1083, %v1081
    %v1096 = vpack.c.bf16 %v1084, %v1082
    %v1097 = vpack.c.bf16 %v1087, %v1085
    %v1098 = vpack.c.bf16 %v1088, %v1086
    %v1099 = vpack.c.bf16 %v1091, %v1089
    %v1100 = vpack.c.bf16 %v1092, %v1090
    %v1101 = vld [vmem:[#allocation14] sm:$0xf]
    %v1102 = vld [vmem:[#allocation14 + $0x4] sm:$0xf]
    %v1103 = vld [vmem:[#allocation14 + $0x8] sm:$0xf]
    %v1104 = vld [vmem:[#allocation14 + $0xc] sm:$0xf]
    %v1105 = vld [vmem:[#allocation14 + $0x10] sm:$0xf]
    %v1106 = vld [vmem:[#allocation14 + $0x14] sm:$0xf]
    %v1107 = vld [vmem:[#allocation14 + $0x18] sm:$0xf]
    %v1108 = vld [vmem:[#allocation14 + $0x1c] sm:$0xf]
    %v1109 = vld [vmem:[#allocation14 + $0x20] sm:$0xf]
    %v1110 = vld [vmem:[#allocation14 + $0x24] sm:$0xf]
    %v1111 = vld [vmem:[#allocation14 + $0x28] sm:$0xf]
    %v1112 = vld [vmem:[#allocation14 + $0x2c] sm:$0xf]
    %v1113 = vld [vmem:[#allocation14 + $0x30] sm:$0xf]
    %v1114 = vld [vmem:[#allocation14 + $0x34] sm:$0xf]
    %v1115 = vld [vmem:[#allocation14 + $0x38] sm:$0xf]
    %v1116 = vld [vmem:[#allocation14 + $0x3c] sm:$0xf]
    %v1117 = vld [vmem:[#allocation14 + $0x40] sm:$0xf]
    %v1118 = vld [vmem:[#allocation14 + $0x44] sm:$0xf]
    %v1119 = vld [vmem:[#allocation14 + $0x48] sm:$0xf]
    %v1120 = vld [vmem:[#allocation14 + $0x4c] sm:$0xf]
    %v1121 = vld [vmem:[#allocation14 + $0x50] sm:$0xf]
    %v1122 = vld [vmem:[#allocation14 + $0x54] sm:$0xf]
    %v1123 = vld [vmem:[#allocation14 + $0x58] sm:$0xf]
    %v1124 = vld [vmem:[#allocation14 + $0x5c] sm:$0xf]
    %v1125 = vld [vmem:[#allocation14 + $0x60] sm:$0xf]
    %v1126 = vld [vmem:[#allocation14 + $0x64] sm:$0xf]
    %v1127 = vld [vmem:[#allocation14 + $0x68] sm:$0xf]
    %v1128 = vld [vmem:[#allocation14 + $0x6c] sm:$0xf]
    %v1129 = vld [vmem:[#allocation14 + $0x70] sm:$0xf]
    %v1130 = vld [vmem:[#allocation14 + $0x74] sm:$0xf]
    %v1131 = vld [vmem:[#allocation14 + $0x78] sm:$0xf]
    %v1132 = vld [vmem:[#allocation14 + $0x7c] sm:$0xf]
    %v1165 = vunpack.c.l.b16 %v1101
    %v1166 = vunpack.c.l.b16 %v1102
    %v1167 = vunpack.c.l.b16 %v1103
    %v1168 = vunpack.c.l.b16 %v1104
    %v1169 = vunpack.c.l.b16 %v1105
    %v1170 = vunpack.c.l.b16 %v1106
    %v1171 = vunpack.c.l.b16 %v1107
    %v1172 = vunpack.c.l.b16 %v1108
    %v1173 = vunpack.c.l.b16 %v1109
    %v1174 = vunpack.c.l.b16 %v1110
    %v1175 = vunpack.c.l.b16 %v1111
    %v1176 = vunpack.c.l.b16 %v1112
    %v1177 = vunpack.c.l.b16 %v1113
    %v1178 = vunpack.c.l.b16 %v1114
    %v1179 = vunpack.c.l.b16 %v1115
    %v1180 = vunpack.c.l.b16 %v1116
    %v1181 = vunpack.c.l.b16 %v1117
    %v1182 = vunpack.c.l.b16 %v1118
    %v1183 = vunpack.c.l.b16 %v1119
    %v1184 = vunpack.c.l.b16 %v1120
    %v1185 = vunpack.c.l.b16 %v1121
    %v1186 = vunpack.c.l.b16 %v1122
    %v1187 = vunpack.c.l.b16 %v1123
    %v1188 = vunpack.c.l.b16 %v1124
    %v1189 = vunpack.c.l.b16 %v1125
    %v1190 = vunpack.c.l.b16 %v1126
    %v1191 = vunpack.c.l.b16 %v1127
    %v1192 = vunpack.c.l.b16 %v1128
    %v1193 = vunpack.c.l.b16 %v1129
    %v1194 = vunpack.c.l.b16 %v1130
    %v1195 = vunpack.c.l.b16 %v1131
    %v1196 = vunpack.c.l.b16 %v1132
    %v1197 = vpack.c.b16 %v1166, %v1165
    %v1198 = vpack.c.b16 %v1168, %v1167
    %v1199 = vpack.c.b16 %v1170, %v1169
    %v1200 = vpack.c.b16 %v1172, %v1171
    %v1201 = vpack.c.b16 %v1174, %v1173
    %v1202 = vpack.c.b16 %v1176, %v1175
    %v1203 = vpack.c.b16 %v1178, %v1177
    %v1204 = vpack.c.b16 %v1180, %v1179
    %v1205 = vpack.c.b16 %v1182, %v1181
    %v1206 = vpack.c.b16 %v1184, %v1183
    %v1207 = vpack.c.b16 %v1186, %v1185
    %v1208 = vpack.c.b16 %v1188, %v1187
    %v1209 = vpack.c.b16 %v1190, %v1189
    %v1210 = vpack.c.b16 %v1192, %v1191
    %v1211 = vpack.c.b16 %v1194, %v1193
    %v1212 = vpack.c.b16 %v1196, %v1195
    %1229 = vmatprep.subr.bf16.mxu0 0
    %1230 = vmatpush1.bf16.msra.mxu0 %v1197
    %1231 = vmatprep.subr.bf16.mxu0 0
    %1232 = vmatpush1.bf16.msra.mxu0 %v1198
    %1233 = vmatprep.subr.bf16.mxu0 0
    %1234 = vmatpush1.bf16.msra.mxu0 %v1199
    %1235 = vmatprep.subr.bf16.mxu0 0
    %1236 = vmatpush1.bf16.msra.mxu0 %v1200
    %1237 = vmatprep.subr.bf16.mxu0 0
    %1238 = vmatpush1.bf16.msra.mxu0 %v1201
    %1239 = vmatprep.subr.bf16.mxu0 0
    %1240 = vmatpush1.bf16.msra.mxu0 %v1202
    %1241 = vmatprep.subr.bf16.mxu0 0
    %1242 = vmatpush1.bf16.msra.mxu0 %v1203
    %1243 = vmatprep.subr.bf16.mxu0 0
    %1244 = vmatpush1.bf16.msra.mxu0 %v1204
    %1245 = vmatprep.subr.bf16.mxu0 0
    %1246 = vmatpush1.bf16.msra.mxu0 %v1205
    %1247 = vmatprep.subr.bf16.mxu0 0
    %1248 = vmatpush1.bf16.msra.mxu0 %v1206
    %1249 = vmatprep.subr.bf16.mxu0 0
    %1250 = vmatpush1.bf16.msra.mxu0 %v1207
    %1251 = vmatprep.subr.bf16.mxu0 0
    %1252 = vmatpush1.bf16.msra.mxu0 %v1208
    %1253 = vmatprep.subr.bf16.mxu0 0
    %1254 = vmatpush1.bf16.msra.mxu0 %v1209
    %1255 = vmatprep.subr.bf16.mxu0 0
    %1256 = vmatpush1.bf16.msra.mxu0 %v1210
    %1257 = vmatprep.subr.bf16.mxu0 0
    %1258 = vmatpush1.bf16.msra.mxu0 %v1211
    %1259 = vmatprep.subr.bf16.mxu0 0
    %1260 = vmatpush1.bf16.msra.mxu0 %v1212
    %1261 = vmatprep.mubr.bf16.mxu0 %v1094
    %1262 = vmatmul.mubr.bf16.gmra.mrb[0].mxu0 %v1093
    %v1263 = vpop.f32.mrb[0].mxu0
    %v1264 = vadd.f32 0.0, %v1263
    %v1265 = vpop.f32.mrb[0].mxu0
    %v1266 = vpop.f32.mrb[0].mxu0
    %v1267 = vadd.f32 0.0, %v1266
    %v1268 = vpop.f32.mrb[0].mxu0
    %1269 = vmatprep.mubr.bf16.mxu0 %v1096
    %1270 = vmatmul.mubr.bf16.gmra.mrb[0].mxu0 %v1095
    %v1271 = vpop.f32.mrb[0].mxu0
    %v1272 = vadd.f32 0.0, %v1271
    %v1273 = vpop.f32.mrb[0].mxu0
    %v1274 = vpop.f32.mrb[0].mxu0
    %v1275 = vadd.f32 0.0, %v1274
    %v1276 = vpop.f32.mrb[0].mxu0
    %1277 = vmatprep.mubr.bf16.mxu0 %v1098
    %1278 = vmatmul.mubr.bf16.gmra.mrb[0].mxu0 %v1097
    %v1279 = vpop.f32.mrb[0].mxu0
    %v1280 = vadd.f32 0.0, %v1279
    %v1281 = vpop.f32.mrb[0].mxu0
    %v1282 = vpop.f32.mrb[0].mxu0
    %v1283 = vadd.f32 0.0, %v1282
    %v1284 = vpop.f32.mrb[0].mxu0
    %1285 = vmatprep.mubr.bf16.mxu0 %v1100
    %1286 = vmatmul.mubr.bf16.gmra.mrb[0].mxu0 %v1099
    %v1287 = vpop.f32.mrb[0].mxu0
    %v1288 = vadd.f32 0.0, %v1287
    %v1289 = vpop.f32.mrb[0].mxu0
    %v1290 = vpop.f32.mrb[0].mxu0
    %v1291 = vadd.f32 0.0, %v1290
    %v1292 = vpop.f32.mrb[0].mxu0
    %1293 = vdwg.mxu0
    %v1294 = vadd.f32 %v1264, %v1267
    %v1295 = vadd.f32 %v1294, %v1272
    %v1296 = vadd.f32 %v1295, %v1275
    %v1297 = vadd.f32 %v1296, %v1280
    %v1298 = vadd.f32 %v1297, %v1283
    %v1299 = vadd.f32 %v1298, %v1288
    %v1300 = vadd.f32 %v1299, %v1291
    %v1301 = vrot.slane %v1300, 4
    %v1302 = vadd.f32 %v1300, %v1301
    %v1303 = vrot.slane %v1302, 2
    %v1304 = vadd.f32 %v1302, %v1303
    %v1305 = vrot.slane %v1304, 1
    %v1306 = vadd.f32 %v1304, %v1305
    %v1307 = vmul.f32 %v1306, 0.015625
    %v1308 = vsub.f32 %v1264, %v1307
    %v1309 = vsub.f32 %v1267, %v1307
    %v1310 = vsub.f32 %v1272, %v1307
    %v1311 = vsub.f32 %v1275, %v1307
    %v1312 = vsub.f32 %v1280, %v1307
    %v1313 = vsub.f32 %v1283, %v1307
    %v1314 = vsub.f32 %v1288, %v1307
    %v1315 = vsub.f32 %v1291, %v1307
    %v1316 = vmul.f32 %v1308, %v1308
    %v1317 = vmul.f32 %v1309, %v1309
    %v1318 = vmul.f32 %v1310, %v1310
    %v1319 = vmul.f32 %v1311, %v1311
    %v1320 = vmul.f32 %v1312, %v1312
    %v1321 = vmul.f32 %v1313, %v1313
    %v1322 = vmul.f32 %v1314, %v1314
    %v1323 = vmul.f32 %v1315, %v1315
    %v1324 = vadd.f32 %v1316, %v1317
    %v1325 = vadd.f32 %v1324, %v1318
    %v1326 = vadd.f32 %v1325, %v1319
    %v1327 = vadd.f32 %v1326, %v1320
    %v1328 = vadd.f32 %v1327, %v1321
    %v1329 = vadd.f32 %v1328, %v1322
    %v1330 = vadd.f32 %v1329, %v1323
    %v1331 = vrot.slane %v1330, 4
    %v1332 = vadd.f32 %v1330, %v1331
    %v1333 = vrot.slane %v1332, 2
    %v1334 = vadd.f32 %v1332, %v1333
    %v1335 = vrot.slane %v1334, 1
    %v1336 = vadd.f32 %v1334, %v1335
    %v1337 = vmul.f32 %v1336, 0.015625
    %v1338 = vadd.f32 %v1337, 1e-05
    %v1339 = vrsqrt.pop %v1338
    %v1340 = vmul.f32 %v1308, %v1339
    %v1341 = vmul.f32 %v1309, %v1339
    %v1342 = vmul.f32 %v1310, %v1339
    %v1343 = vmul.f32 %v1311, %v1339
    %v1344 = vmul.f32 %v1312, %v1339
    %v1345 = vmul.f32 %v1313, %v1339
    %v1346 = vmul.f32 %v1314, %v1339
    %v1347 = vmul.f32 %v1315, %v1339
    %v1348 = vld [vmem:[%s11] sm:$0x1]
    %v1350 = vlaneseq
    %v1351 = vshrl.u32 %v1350, 7
    %v1352 = vsub.s32 0, %v1351
    %v1353 = vrot.slane %v1348, %v1352
    %v1355 = vmul.f32 %v1340, %v1353
    %v1356 = vmul.f32 %v1341, %v1353
    %v1357 = vmul.f32 %v1342, %v1353
    %v1358 = vmul.f32 %v1343, %v1353
    %v1359 = vmul.f32 %v1344, %v1353
    %v1360 = vmul.f32 %v1345, %v1353
    %v1361 = vmul.f32 %v1346, %v1353
    %v1362 = vmul.f32 %v1347, %v1353
    %v1363 = vld [vmem:[%s12] sm:$0x1]
    %v1365 = vlaneseq
    %v1366 = vshrl.u32 %v1365, 7
    %v1367 = vsub.s32 0, %v1366
    %v1368 = vrot.slane %v1363, %v1367
    %v1370 = vadd.f32 %v1355, %v1368
    %v1371 = vadd.f32 %v1356, %v1368
    %v1372 = vadd.f32 %v1357, %v1368
    %v1373 = vadd.f32 %v1358, %v1368
    %v1374 = vadd.f32 %v1359, %v1368
    %v1375 = vadd.f32 %v1360, %v1368
    %v1376 = vadd.f32 %v1361, %v1368
    %v1377 = vadd.f32 %v1362, %v1368
    %v1378 = vmax.f32 %v1370, 0.0
    %v1379 = vmax.f32 %v1371, 0.0
    %v1380 = vmax.f32 %v1372, 0.0
    %v1381 = vmax.f32 %v1373, 0.0
    %v1382 = vmax.f32 %v1374, 0.0
    %v1383 = vmax.f32 %v1375, 0.0
    %v1384 = vmax.f32 %v1376, 0.0
    %v1385 = vmax.f32 %v1377, 0.0
    %1386 = vst [vmem:[#allocation15] sm:$0xff] %v1378
    %1387 = vst [vmem:[#allocation15 + $0x8] sm:$0xff] %v1379
    %1388 = vst [vmem:[#allocation15 + $0x10] sm:$0xff] %v1380
    %1389 = vst [vmem:[#allocation15 + $0x18] sm:$0xff] %v1381
    %1390 = vst [vmem:[#allocation15 + $0x20] sm:$0xff] %v1382
    %1391 = vst [vmem:[#allocation15 + $0x28] sm:$0xff] %v1383
    %1392 = vst [vmem:[#allocation15 + $0x30] sm:$0xff] %v1384
    %1393 = vst [vmem:[#allocation15 + $0x38] sm:$0xff] %v1385
    // Predicated region
    $region82: #{tpu_custom_call.1} parent=1 // pred_check
      _
    $region83: #{tpu_custom_call.1} parent=1 // pred_check_branch
      %1395 = sbr.rel (0) target = $region85
    $region84: #{tpu_custom_call.1} parent=1 // pred_region
      %s1397 = ssub.s32 1024, 1024
      %1398 = vsyncadd [#allocation5], %s1397
      %s1399 = sshll.u32 [#allocation15], 4
      %s1400 = int_to_ptr.vmem [resolvable:$true] %s1399
      %1405 = dma.vmem_to_hbm [thread:$0]  %s1400, 1024, %s13, [#allocation5], 128, 128, 8
    $region85: #{tpu_custom_call.1} parent=1 // pred_fallthru
      _
    // Predicated region
    $region86: #{tpu_custom_call.1} parent=1 // pred_check
      _
    $region87: #{tpu_custom_call.1} parent=1 // pred_check_branch
      %1407 = sbr.rel (0) target = $region89
    $region88: #{tpu_custom_call.1} parent=1 // pred_region
      %1408 = dma.done [#allocation5], 1024
    $region89: #{tpu_custom_call.1} parent=1 // pred_fallthru
      _
    %1409 = vsyncpa [#allocation4], 1
    %1410 = vsyncpa [#allocation7], 1
    %1411 = vsyncpa [#allocation10], 1
    %1412 = vsyncpa [#allocation13], 1
    %1413 = vsyncpa [#allocation5], 1

</llo_original>
